<compile_context>
chip_gen: v5e
topology: v5e:2x2
jax: 0.10.0
libtpu: 0.0.40
codegen_flags: <defaults>
</compile_context>

<pallas_src>
import jax
import jax.numpy as jnp
from jax.experimental import pallas as pl
from jax.experimental.pallas import tpu as pltpu

BN_EPS = 1e-5


def _round_up(n, m):
    return (n + m - 1) // m * m


# ---------------------------------------------------------------------------
# Kernel: 3 MXU matmuls (eval BN folded into W1/W2), bias + ReLU on the f32
# accumulators.  Dropout == identity in eval mode.
# ---------------------------------------------------------------------------
def _head_kernel(x_ref, w1_ref, c1_ref, w2_ref, c2_ref, w3_ref, b3_ref, o_ref):
    dt = w1_ref.dtype                       # MXU compute dtype (bf16 or f32)
    x = x_ref[...].astype(dt)               # f32 HBM tile -> compute dtype in-kernel

    h1 = jnp.dot(x, w1_ref[...], preferred_element_type=jnp.float32) + c1_ref[...]
    h1 = jnp.maximum(h1, 0.0)

    h2 = jnp.dot(h1.astype(dt), w2_ref[...],
                 preferred_element_type=jnp.float32) + c2_ref[...]
    h2 = jnp.maximum(h2, 0.0)

    o_ref[...] = (jnp.dot(h2.astype(dt), w3_ref[...],
                          preferred_element_type=jnp.float32)
                  + b3_ref[...]).astype(o_ref.dtype)


# ---------------------------------------------------------------------------
# One-time parameter preparation (hoisted out of the per-call wrapper).
# ---------------------------------------------------------------------------
def _fold_bn_into_linear(w, b, gamma, beta, mean, var):
    """Fold eval-mode BatchNorm1d into the preceding Linear: y = x @ W' + b'."""
    scale = gamma / jnp.sqrt(var + BN_EPS)      # [out], done in f32
    return w * scale[None, :], (b - mean) * scale + beta


def prepare_twin_head_params(params, *, compute_dtype=jnp.bfloat16):
    """Fold BN, cast weights to the MXU dtype, pad output dim to 128 lanes.
    Call ONCE at load time; feed the result to twin_verification_head()."""
    w1f, c1 = _fold_bn_into_linear(params["w1"], params["b1"],
                                   params["bn1_gamma"], params["bn1_beta"],
                                   params["bn1_mean"], params["bn1_var"])
    w2f, c2 = _fold_bn_into_linear(params["w2"], params["b2"],
                                   params["bn2_gamma"], params["bn2_beta"],
                                   params["bn2_mean"], params["bn2_var"])
    w3, b3 = params["w3"], params["b3"]
    d_out = int(w3.shape[1])
    d_out_p = _round_up(d_out, 128)             # lane-dense, unmasked stores
    if d_out_p != d_out:
        w3 = jnp.pad(w3, ((0, 0), (0, d_out_p - d_out)))
        b3 = jnp.pad(b3, ((0, d_out_p - d_out),))
    return dict(
        w1=w1f.astype(compute_dtype), c1=c1.reshape(1, -1).astype(jnp.float32),
        w2=w2f.astype(compute_dtype), c2=c2.reshape(1, -1).astype(jnp.float32),
        w3=w3.astype(compute_dtype), b3=b3.reshape(1, -1).astype(jnp.float32),
        output_dim=d_out,
    )


# ---------------------------------------------------------------------------
# Generation-aware tiling helpers.
# ---------------------------------------------------------------------------
def _tpu_generation_info():
    kind = ""
    try:
        kind = jax.devices()[0].device_kind.lower()
    except Exception:
        pass
    is_v5e = ("v5 lite" in kind) or ("v5e" in kind) or ("v5lite" in kind)
    dual_tc = ("v7" in kind) or ("tpu7" in kind) or ("7x" in kind)
    try:
        vmem_cap = int(pltpu.get_tpu_info().vmem_capacity_bytes)
    except Exception:
        vmem_cap = 64 * 2 ** 20                 # conservative (v7x per-TC VMEM)
    return is_v5e, dual_tc, vmem_cap


# ---------------------------------------------------------------------------
# Forward wrapper.
# ---------------------------------------------------------------------------
def twin_verification_head(x, prepared, *, tb=None, out_dtype=jnp.float32):
    """Eval-mode TwinVerificationHead forward.  x: [B, input_dim] f32;
    `prepared` comes from prepare_twin_head_params()."""
    B, D_in = x.shape
    w1, c1 = prepared["w1"], prepared["c1"]
    w2, c2 = prepared["w2"], prepared["c2"]
    w3, b3 = prepared["w3"], prepared["b3"]
    H = w1.shape[1]
    D_out_p = w3.shape[1]
    D_out = prepared["output_dim"]
    cdt = w1.dtype
    isz = jnp.dtype(cdt).itemsize
    osz = jnp.dtype(out_dtype).itemsize

    is_v5e, dual_tc, vmem_cap = _tpu_generation_info()
    gran = 128 if is_v5e else 256               # MXU M-granularity (4x128^2 vs 2x256^2)
    vmem_budget = int(0.8 * vmem_cap)           # headroom for Mosaic internal scratch

    w_bytes = (D_in * H + H * H + H * D_out_p) * isz        # single-buffered weights
    bias_bytes = (2 * H + D_out_p) * 4

    def vmem_usage(t):
        return (w_bytes + bias_bytes
                + 2 * t * D_in * 4              # f32 x tile (double-buffered)
                + 2 * t * D_out_p * osz         # output tile (double-buffered)
                + 2 * t * H * 4                 # h1/h2 f32 intermediates
                + t * max(D_in, H) * isz)       # in-kernel cast scratch

    # ---- batch tiling: biggest tile that fits VMEM; even steps on dual-TC --
    if tb is None:
        b16 = _round_up(B, 16)                              # bf16: 16 sublanes/vreg
        steps = 2 if (dual_tc and b16 > gran) else 1        # keep both v7x TCs busy
        while True:
            t = b16 if steps == 1 else _round_up(-(-b16 // steps), gran)
            if vmem_usage(t) <= vmem_budget or t <= gran:
                tb = t
                break
            steps += 2 if dual_tc else 1                    # even step counts on v7x
    tb = _round_up(tb, 16)
    B_pad = _round_up(B, tb)
    x_p = x if B_pad == B else jnp.pad(x, ((0, B_pad - B), (0, 0)))
    grid = (B_pad // tb,)

    vmem_limit = int(min(vmem_budget,
                         max(16 * 2 ** 20, int(1.25 * vmem_usage(tb)))))

    cost = pl.CostEstimate(
        flops=int(2 * B_pad * (D_in * H + H * H + H * D_out_p)),
        transcendentals=0,
        bytes_accessed=int(B_pad * D_in * 4 + w_bytes + bias_bytes
                           + B_pad * D_out_p * osz),
    )

    rep = lambda i: (0, 0)                      # grid-invariant weight/bias blocks

    def call(single_buffer_weights):
        wkw = {"pipeline_mode": pl.Buffered(1)} if single_buffer_weights else {}
        return pl.pallas_call(
            _head_kernel,
            out_shape=jax.ShapeDtypeStruct((B_pad, D_out_p), out_dtype),
            grid_spec=pltpu.PrefetchScalarGridSpec(
                num_scalar_prefetch=0,
                grid=grid,
                in_specs=[
                    pl.BlockSpec((tb, D_in), lambda i: (i, 0)),   # x batch tile (f32)
                    pl.BlockSpec((D_in, H), rep, **wkw),          # W1 (BN folded)
                    pl.BlockSpec((1, H), rep, **wkw),             # bias1 (BN folded)
                    pl.BlockSpec((H, H), rep, **wkw),             # W2 (BN folded)
                    pl.BlockSpec((1, H), rep, **wkw),             # bias2 (BN folded)
                    pl.BlockSpec((H, D_out_p), rep, **wkw),       # W3
                    pl.BlockSpec((1, D_out_p), rep, **wkw),       # b3
                ],
                out_specs=pl.BlockSpec((tb, D_out_p), lambda i: (i, 0)),
            ),
            compiler_params=pltpu.CompilerParams(
                dimension_semantics=("parallel",),
                vmem_limit_bytes=vmem_limit),
            cost_estimate=cost,
        )(x_p, w1, c1, w2, c2, w3, b3)

    try:
        out = call(True)    # single-buffer grid-invariant weights (no overlap to gain)
    except Exception:
        # TODO(synk): drop fallback once pl.Buffered(1) single-buffering is
        # guaranteed on all deployed jax versions.
        out = call(False)

    return out[:B, :D_out]


# ---------------------------------------------------------------------------
# Pure-JAX f32 reference and parameter init (for validation only).
# ---------------------------------------------------------------------------
def _reference(x, params):
    def bn(z, g, b, m, v):
        return (z - m) / jnp.sqrt(v + BN_EPS) * g + b

    z = x @ params["w1"] + params["b1"]
    z = jnp.maximum(bn(z, params["bn1_gamma"], params["bn1_beta"],
                       params["bn1_mean"], params["bn1_var"]), 0.0)
    z = z @ params["w2"] + params["b2"]
    z = jnp.maximum(bn(z, params["bn2_gamma"], params["bn2_beta"],
                       params["bn2_mean"], params["bn2_var"]), 0.0)
    return z @ params["w3"] + params["b3"]


def _init_params(key, input_dim, hidden_dim, output_dim):
    ks = jax.random.split(key, 10)

    def lin(kw, kb, fan_in, fan_out):
        bound = 1.0 / jnp.sqrt(fan_in)
        w = jax.random.uniform(kw, (fan_in, fan_out), jnp.float32, -bound, bound)
        b = jax.random.uniform(kb, (fan_out,), jnp.float32, -bound, bound)
        return w, b

    w1, b1 = lin(ks[0], ks[1], input_dim, hidden_dim)
    w2, b2 = lin(ks[2], ks[3], hidden_dim, hidden_dim)
    w3, b3 = lin(ks[4], ks[5], hidden_dim, output_dim)

    bn1_gamma = 1.0 + 0.1 * jax.random.normal(ks[6], (hidden_dim,), jnp.float32)
    bn1_beta = 0.05 * jax.random.normal(ks[7], (hidden_dim,), jnp.float32)
    bn1_mean = 0.1 * jax.random.normal(ks[8], (hidden_dim,), jnp.float32)
    bn1_var = jnp.abs(1.0 + 0.1 * jax.random.normal(ks[9], (hidden_dim,), jnp.float32))

    k2 = jax.random.split(ks[9], 4)
    bn2_gamma = 1.0 + 0.1 * jax.random.normal(k2[0], (hidden_dim,), jnp.float32)
    bn2_beta = 0.05 * jax.random.normal(k2[1], (hidden_dim,), jnp.float32)
    bn2_mean = 0.1 * jax.random.normal(k2[2], (hidden_dim,), jnp.float32)
    bn2_var = jnp.abs(1.0 + 0.1 * jax.random.normal(k2[3], (hidden_dim,), jnp.float32))

    return dict(w1=w1, b1=b1, w2=w2, b2=b2, w3=w3, b3=b3,
                bn1_gamma=bn1_gamma, bn1_beta=bn1_beta,
                bn1_mean=bn1_mean, bn1_var=bn1_var,
                bn2_gamma=bn2_gamma, bn2_beta=bn2_beta,
                bn2_mean=bn2_mean, bn2_var=bn2_var)


if __name__ == "__main__":
    # Small shapes consistent with the module ([batch, input_dim] input).
    # batch is ragged (not a multiple of 16) and output_dim is not a multiple
    # of 128 to exercise the padding paths.
    batch, input_dim, hidden_dim, output_dim = 10, 256, 256, 120

    key = jax.random.PRNGKey(0)
    k_x, k_p, k_x2 = jax.random.split(key, 3)
    x = jax.random.normal(k_x, (batch, input_dim), jnp.float32)
    params = _init_params(k_p, input_dim, hidden_dim, output_dim)
    ref = _reference(x, params)

    # Fast path: bf16 MXU operands, f32 accumulation.  Params prepared ONCE.
    prepared_bf16 = jax.tree_util.tree_map(
        jax.block_until_ready,
        prepare_twin_head_params(params, compute_dtype=jnp.bfloat16))
    out = jax.block_until_ready(twin_verification_head(x, prepared_bf16))
    assert out.shape == (batch, output_dim)
    assert jnp.allclose(out, ref, atol=5e-2, rtol=5e-2), \
        "bf16 path mismatch vs reference"

    # Exact-semantics path: f32 operands end-to-end.
    prepared_f32 = prepare_twin_head_params(params, compute_dtype=jnp.float32)
    out32 = jax.block_until_ready(twin_verification_head(x, prepared_f32))
    assert jnp.allclose(out32, ref, atol=1e-3, rtol=1e-3), \
        "f32 path mismatch vs reference"

    # Larger ragged batch to exercise the multi-tile / dual-TC tiling branch.
    x2 = jax.random.normal(k_x2, (300, input_dim), jnp.float32)
    ref2 = _reference(x2, params)
    out2 = jax.block_until_ready(twin_verification_head(x2, prepared_bf16))
    assert out2.shape == (300, output_dim)
    assert jnp.allclose(out2, ref2, atol=5e-2, rtol=5e-2), \
        "bf16 path (batch=300) mismatch vs reference"

    print("KERNEL_OK")
</pallas_src>

<mosaic_0001>
module attributes {stable_mosaic.version = 11 : i64} {
  func.func @_head_kernel(%arg0: i32, %arg1: memref<16x256xf32, #tpu.memory_space<vmem>>, %arg2: memref<256x256xbf16, #tpu.memory_space<vmem>>, %arg3: memref<1x256xf32, #tpu.memory_space<vmem>>, %arg4: memref<256x256xbf16, #tpu.memory_space<vmem>>, %arg5: memref<1x256xf32, #tpu.memory_space<vmem>>, %arg6: memref<256x128xbf16, #tpu.memory_space<vmem>>, %arg7: memref<1x128xf32, #tpu.memory_space<vmem>>, %arg8: memref<16x128xf32, #tpu.memory_space<vmem>>) attributes {dimension_semantics = [#tpu.dimension_semantics<parallel>], iteration_bounds = array<i64: 1>, scalar_prefetch = 0 : i64, scratch_operands = 0 : i64, tpu.core_type = #tpu.core_type<tc>, window_params = [{transform_indices = @transform_0, window_bounds = array<i64: 16, 256>}, {pipeline_mode = #tpu.pipeline_mode<synchronous>, transform_indices = @transform_1, window_bounds = array<i64: 256, 256>}, {pipeline_mode = #tpu.pipeline_mode<synchronous>, transform_indices = @transform_2, window_bounds = array<i64: 1, 256>}, {pipeline_mode = #tpu.pipeline_mode<synchronous>, transform_indices = @transform_3, window_bounds = array<i64: 256, 256>}, {pipeline_mode = #tpu.pipeline_mode<synchronous>, transform_indices = @transform_4, window_bounds = array<i64: 1, 256>}, {pipeline_mode = #tpu.pipeline_mode<synchronous>, transform_indices = @transform_5, window_bounds = array<i64: 256, 128>}, {pipeline_mode = #tpu.pipeline_mode<synchronous>, transform_indices = @transform_6, window_bounds = array<i64: 1, 128>}, {transform_indices = @transform_7, window_bounds = array<i64: 16, 128>}]} {
    %c0 = arith.constant 0 : index
    %c0_0 = arith.constant 0 : index
    %0 = vector.load %arg1[%c0, %c0_0] : memref<16x256xf32, #tpu.memory_space<vmem>>, vector<16x256xf32>
    %1 = arith.truncf %0 : vector<16x256xf32> to vector<16x256xbf16>
    %c0_1 = arith.constant 0 : index
    %c0_2 = arith.constant 0 : index
    %2 = vector.load %arg2[%c0_1, %c0_2] : memref<256x256xbf16, #tpu.memory_space<vmem>>, vector<256x256xbf16>
    %cst = arith.constant dense<0.000000e+00> : vector<16x256xf32>
    %3 = tpu.matmul %1, %2, %cst {dimension_numbers = #tpu.dot_dimension_numbers<[1], [0], [0], [1], [0, 0, 1, 1], [], []>} : vector<16x256xbf16>, vector<256x256xbf16>, vector<16x256xf32> -> vector<16x256xf32>
    %c0_3 = arith.constant 0 : index
    %c0_4 = arith.constant 0 : index
    %4 = vector.load %arg3[%c0_3, %c0_4] : memref<1x256xf32, #tpu.memory_space<vmem>>, vector<1x256xf32>
    %5 = vector.broadcast %4 : vector<1x256xf32> to vector<16x256xf32>
    %6 = arith.addf %3, %5 : vector<16x256xf32>
    %cst_5 = arith.constant 0.000000e+00 : f32
    %7 = vector.broadcast %cst_5 : f32 to vector<16x256xf32>
    %8 = arith.maximumf %6, %7 : vector<16x256xf32>
    %9 = arith.truncf %8 : vector<16x256xf32> to vector<16x256xbf16>
    %c0_6 = arith.constant 0 : index
    %c0_7 = arith.constant 0 : index
    %10 = vector.load %arg4[%c0_6, %c0_7] : memref<256x256xbf16, #tpu.memory_space<vmem>>, vector<256x256xbf16>
    %cst_8 = arith.constant dense<0.000000e+00> : vector<16x256xf32>
    %11 = tpu.matmul %9, %10, %cst_8 {dimension_numbers = #tpu.dot_dimension_numbers<[1], [0], [0], [1], [0, 0, 1, 1], [], []>} : vector<16x256xbf16>, vector<256x256xbf16>, vector<16x256xf32> -> vector<16x256xf32>
    %c0_9 = arith.constant 0 : index
    %c0_10 = arith.constant 0 : index
    %12 = vector.load %arg5[%c0_9, %c0_10] : memref<1x256xf32, #tpu.memory_space<vmem>>, vector<1x256xf32>
    %13 = vector.broadcast %12 : vector<1x256xf32> to vector<16x256xf32>
    %14 = arith.addf %11, %13 : vector<16x256xf32>
    %cst_11 = arith.constant 0.000000e+00 : f32
    %15 = vector.broadcast %cst_11 : f32 to vector<16x256xf32>
    %16 = arith.maximumf %14, %15 : vector<16x256xf32>
    %17 = arith.truncf %16 : vector<16x256xf32> to vector<16x256xbf16>
    %c0_12 = arith.constant 0 : index
    %c0_13 = arith.constant 0 : index
    %18 = vector.load %arg6[%c0_12, %c0_13] : memref<256x128xbf16, #tpu.memory_space<vmem>>, vector<256x128xbf16>
    %cst_14 = arith.constant dense<0.000000e+00> : vector<16x128xf32>
    %19 = tpu.matmul %17, %18, %cst_14 {dimension_numbers = #tpu.dot_dimension_numbers<[1], [0], [0], [1], [0, 0, 1, 1], [], []>} : vector<16x256xbf16>, vector<256x128xbf16>, vector<16x128xf32> -> vector<16x128xf32>
    %c0_15 = arith.constant 0 : index
    %c0_16 = arith.constant 0 : index
    %20 = vector.load %arg7[%c0_15, %c0_16] : memref<1x128xf32, #tpu.memory_space<vmem>>, vector<1x128xf32>
    %21 = vector.broadcast %20 : vector<1x128xf32> to vector<16x128xf32>
    %22 = arith.addf %19, %21 : vector<16x128xf32>
    %c0_17 = arith.constant 0 : index
    %c0_18 = arith.constant 0 : index
    %23 = vector.load %arg8[%c0_17, %c0_18] : memref<16x128xf32, #tpu.memory_space<vmem>>, vector<16x128xf32>
    tpu.vector_store %arg8[%c0_17, %c0_18], %22 {strides = array<i32>} : memref<16x128xf32, #tpu.memory_space<vmem>>, vector<16x128xf32>,
    return
  }
  func.func @transform_0(%arg0: i32) -> (i32, i32) {
    %c0_i32 = arith.constant 0 : i32
    %c0_i32_0 = arith.constant 0 : i32
    return %arg0, %c0_i32 : i32, i32
  }
  func.func @transform_1(%arg0: i32) -> (i32, i32) {
    %c0_i32 = arith.constant 0 : i32
    %c0_i32_0 = arith.constant 0 : i32
    %c0_i32_1 = arith.constant 0 : i32
    return %c0_i32, %c0_i32_0 : i32, i32
  }
  func.func @transform_2(%arg0: i32) -> (i32, i32) {
    %c0_i32 = arith.constant 0 : i32
    %c0_i32_0 = arith.constant 0 : i32
    %c0_i32_1 = arith.constant 0 : i32
    return %c0_i32, %c0_i32_0 : i32, i32
  }
  func.func @transform_3(%arg0: i32) -> (i32, i32) {
    %c0_i32 = arith.constant 0 : i32
    %c0_i32_0 = arith.constant 0 : i32
    %c0_i32_1 = arith.constant 0 : i32
    return %c0_i32, %c0_i32_0 : i32, i32
  }
  func.func @transform_4(%arg0: i32) -> (i32, i32) {
    %c0_i32 = arith.constant 0 : i32
    %c0_i32_0 = arith.constant 0 : i32
    %c0_i32_1 = arith.constant 0 : i32
    return %c0_i32, %c0_i32_0 : i32, i32
  }
  func.func @transform_5(%arg0: i32) -> (i32, i32) {
    %c0_i32 = arith.constant 0 : i32
    %c0_i32_0 = arith.constant 0 : i32
    %c0_i32_1 = arith.constant 0 : i32
    return %c0_i32, %c0_i32_0 : i32, i32
  }
  func.func @transform_6(%arg0: i32) -> (i32, i32) {
    %c0_i32 = arith.constant 0 : i32
    %c0_i32_0 = arith.constant 0 : i32
    %c0_i32_1 = arith.constant 0 : i32
    return %c0_i32, %c0_i32_0 : i32, i32
  }
  func.func @transform_7(%arg0: i32) -> (i32, i32) {
    %c0_i32 = arith.constant 0 : i32
    %c0_i32_0 = arith.constant 0 : i32
    return %arg0, %c0_i32 : i32, i32
  }
}

module attributes {stable_mosaic.version = 11 : i64} {
  func.func @_head_kernel(%arg0: i32, %arg1: memref<16x256xf32, #tpu.memory_space<vmem>>, %arg2: memref<256x256xbf16, #tpu.memory_space<vmem>>, %arg3: memref<1x256xf32, #tpu.memory_space<vmem>>, %arg4: memref<256x256xbf16, #tpu.memory_space<vmem>>, %arg5: memref<1x256xf32, #tpu.memory_space<vmem>>, %arg6: memref<256x128xbf16, #tpu.memory_space<vmem>>, %arg7: memref<1x128xf32, #tpu.memory_space<vmem>>, %arg8: memref<16x128xf32, #tpu.memory_space<vmem>>) attributes {dimension_semantics = [#tpu.dimension_semantics<parallel>], iteration_bounds = array<i64: 1>, scalar_prefetch = 0 : i64, scratch_operands = 0 : i64, tpu.core_type = #tpu.core_type<tc>, window_params = [{transform_indices = @transform_0, window_bounds = array<i64: 16, 256>}, {pipeline_mode = #tpu.pipeline_mode<synchronous>, transform_indices = @transform_1, window_bounds = array<i64: 256, 256>}, {pipeline_mode = #tpu.pipeline_mode<synchronous>, transform_indices = @transform_2, window_bounds = array<i64: 1, 256>}, {pipeline_mode = #tpu.pipeline_mode<synchronous>, transform_indices = @transform_3, window_bounds = array<i64: 256, 256>}, {pipeline_mode = #tpu.pipeline_mode<synchronous>, transform_indices = @transform_4, window_bounds = array<i64: 1, 256>}, {pipeline_mode = #tpu.pipeline_mode<synchronous>, transform_indices = @transform_5, window_bounds = array<i64: 256, 128>}, {pipeline_mode = #tpu.pipeline_mode<synchronous>, transform_indices = @transform_6, window_bounds = array<i64: 1, 128>}, {transform_indices = @transform_7, window_bounds = array<i64: 16, 128>}]} {
    %c0 = arith.constant 0 : index
    %c0_0 = arith.constant 0 : index
    %0 = vector.load %arg1[%c0, %c0_0] : memref<16x256xf32, #tpu.memory_space<vmem>>, vector<16x256xf32>
    %1 = arith.truncf %0 : vector<16x256xf32> to vector<16x256xbf16>
    %c0_1 = arith.constant 0 : index
    %c0_2 = arith.constant 0 : index
    %2 = vector.load %arg2[%c0_1, %c0_2] : memref<256x256xbf16, #tpu.memory_space<vmem>>, vector<256x256xbf16>
    %cst = arith.constant dense<0.000000e+00> : vector<16x256xf32>
    %3 = tpu.matmul %1, %2, %cst {dimension_numbers = #tpu.dot_dimension_numbers<[1], [0], [0], [1], [0, 0, 1, 1], [], []>} : vector<16x256xbf16>, vector<256x256xbf16>, vector<16x256xf32> -> vector<16x256xf32>
    %c0_3 = arith.constant 0 : index
    %c0_4 = arith.constant 0 : index
    %4 = vector.load %arg3[%c0_3, %c0_4] : memref<1x256xf32, #tpu.memory_space<vmem>>, vector<1x256xf32>
    %5 = vector.broadcast %4 : vector<1x256xf32> to vector<16x256xf32>
    %6 = arith.addf %3, %5 : vector<16x256xf32>
    %cst_5 = arith.constant 0.000000e+00 : f32
    %7 = vector.broadcast %cst_5 : f32 to vector<16x256xf32>
    %8 = arith.maximumf %6, %7 : vector<16x256xf32>
    %9 = arith.truncf %8 : vector<16x256xf32> to vector<16x256xbf16>
    %c0_6 = arith.constant 0 : index
    %c0_7 = arith.constant 0 : index
    %10 = vector.load %arg4[%c0_6, %c0_7] : memref<256x256xbf16, #tpu.memory_space<vmem>>, vector<256x256xbf16>
    %cst_8 = arith.constant dense<0.000000e+00> : vector<16x256xf32>
    %11 = tpu.matmul %9, %10, %cst_8 {dimension_numbers = #tpu.dot_dimension_numbers<[1], [0], [0], [1], [0, 0, 1, 1], [], []>} : vector<16x256xbf16>, vector<256x256xbf16>, vector<16x256xf32> -> vector<16x256xf32>
    %c0_9 = arith.constant 0 : index
    %c0_10 = arith.constant 0 : index
    %12 = vector.load %arg5[%c0_9, %c0_10] : memref<1x256xf32, #tpu.memory_space<vmem>>, vector<1x256xf32>
    %13 = vector.broadcast %12 : vector<1x256xf32> to vector<16x256xf32>
    %14 = arith.addf %11, %13 : vector<16x256xf32>
    %cst_11 = arith.constant 0.000000e+00 : f32
    %15 = vector.broadcast %cst_11 : f32 to vector<16x256xf32>
    %16 = arith.maximumf %14, %15 : vector<16x256xf32>
    %17 = arith.truncf %16 : vector<16x256xf32> to vector<16x256xbf16>
    %c0_12 = arith.constant 0 : index
    %c0_13 = arith.constant 0 : index
    %18 = vector.load %arg6[%c0_12, %c0_13] : memref<256x128xbf16, #tpu.memory_space<vmem>>, vector<256x128xbf16>
    %cst_14 = arith.constant dense<0.000000e+00> : vector<16x128xf32>
    %19 = tpu.matmul %17, %18, %cst_14 {dimension_numbers = #tpu.dot_dimension_numbers<[1], [0], [0], [1], [0, 0, 1, 1], [], []>} : vector<16x256xbf16>, vector<256x128xbf16>, vector<16x128xf32> -> vector<16x128xf32>
    %c0_15 = arith.constant 0 : index
    %c0_16 = arith.constant 0 : index
    %20 = vector.load %arg7[%c0_15, %c0_16] : memref<1x128xf32, #tpu.memory_space<vmem>>, vector<1x128xf32>
    %21 = vector.broadcast %20 : vector<1x128xf32> to vector<16x128xf32>
    %22 = arith.addf %19, %21 : vector<16x128xf32>
    %c0_17 = arith.constant 0 : index
    %c0_18 = arith.constant 0 : index
    %23 = vector.load %arg8[%c0_17, %c0_18] : memref<16x128xf32, #tpu.memory_space<vmem>>, vector<16x128xf32>
    tpu.vector_store %arg8[%c0_17, %c0_18], %22 {strides = array<i32>} : memref<16x128xf32, #tpu.memory_space<vmem>>, vector<16x128xf32>,
    return
  }
  func.func @transform_0(%arg0: i32) -> (i32, i32) {
    %c0_i32 = arith.constant 0 : i32
    %c0_i32_0 = arith.constant 0 : i32
    return %arg0, %c0_i32 : i32, i32
  }
  func.func @transform_1(%arg0: i32) -> (i32, i32) {
    %c0_i32 = arith.constant 0 : i32
    %c0_i32_0 = arith.constant 0 : i32
    %c0_i32_1 = arith.constant 0 : i32
    return %c0_i32, %c0_i32_0 : i32, i32
  }
  func.func @transform_2(%arg0: i32) -> (i32, i32) {
    %c0_i32 = arith.constant 0 : i32
    %c0_i32_0 = arith.constant 0 : i32
    %c0_i32_1 = arith.constant 0 : i32
    return %c0_i32, %c0_i32_0 : i32, i32
  }
  func.func @transform_3(%arg0: i32) -> (i32, i32) {
    %c0_i32 = arith.constant 0 : i32
    %c0_i32_0 = arith.constant 0 : i32
    %c0_i32_1 = arith.constant 0 : i32
    return %c0_i32, %c0_i32_0 : i32, i32
  }
  func.func @transform_4(%arg0: i32) -> (i32, i32) {
    %c0_i32 = arith.constant 0 : i32
    %c0_i32_0 = arith.constant 0 : i32
    %c0_i32_1 = arith.constant 0 : i32
    return %c0_i32, %c0_i32_0 : i32, i32
  }
  func.func @transform_5(%arg0: i32) -> (i32, i32) {
    %c0_i32 = arith.constant 0 : i32
    %c0_i32_0 = arith.constant 0 : i32
    %c0_i32_1 = arith.constant 0 : i32
    return %c0_i32, %c0_i32_0 : i32, i32
  }
  func.func @transform_6(%arg0: i32) -> (i32, i32) {
    %c0_i32 = arith.constant 0 : i32
    %c0_i32_0 = arith.constant 0 : i32
    %c0_i32_1 = arith.constant 0 : i32
    return %c0_i32, %c0_i32_0 : i32, i32
  }
  func.func @transform_7(%arg0: i32) -> (i32, i32) {
    %c0_i32 = arith.constant 0 : i32
    %c0_i32_0 = arith.constant 0 : i32
    return %arg0, %c0_i32 : i32, i32
  }
}

</mosaic_0001>

<llo_original>
// kernel: tpu_custom_call.1
$region0: #{tpu_custom_call.1}
  #allocation0 [shape = 'u32[]', space=smem, size = 0x4, offset = 0x4, fixed_abs, tag = 'smem constant byte address 0x4 - core index']
  #allocation1 [shape = 'u32[72,128]{1,0:T(1,128)}', space=vmem, size = 0x9000, scoped, tag = 'internal scratch']
  %s0 = inlined_call_operand.hbm [shape: f32[16,256], index: 0, kind: input, shape index: {}]
  %s1 = inlined_call_operand.hbm [shape: bf16[256,256], index: 1, kind: input, shape index: {}]
  %s2 = inlined_call_operand.hbm [shape: f32[1,256], index: 2, kind: input, shape index: {}]
  %s3 = inlined_call_operand.hbm [shape: bf16[256,256], index: 3, kind: input, shape index: {}]
  %s4 = inlined_call_operand.vmem [shape: f32[1,256], index: 4, kind: input, shape index: {}]
  %s5 = inlined_call_operand.hbm [shape: bf16[256,128], index: 5, kind: input, shape index: {}]
  %s6 = inlined_call_operand.vmem [shape: f32[1,128], index: 6, kind: input, shape index: {}]
  %s7 = inlined_call_operand.hbm [shape: f32[16,128], index: 7, kind: output, shape index: {}]
  %s8 = sld [smem:[#allocation0]]
  $region58: #{tpu_custom_call.1} parent=0
    _
  %s10 = ssub.s32 1, %s8
  %s11 = scalar_select 0, %s10, %s8
  $region1: #{tpu_custom_call.1} parent=0
    #allocation2 [shape = 'u8[16384]{0}', space=vmem, size = 0x4000, scoped, tag = 'input window, operand 0, single buffered']
    #allocation3 [shape = 's32[1]{0}', space=sflag, size = 0x4, scoped, tag = 'scoped memory for tpu_custom_call.1']
    #allocation4 [shape = 's32[1]{0}', space=sflag, size = 0x4, scoped, tag = 'scoped memory for tpu_custom_call.1']
    #allocation5 [shape = 'u8[131072]{0}', space=vmem, size = 0x20000, scoped, tag = 'input window, operand 1, single buffered']
    #allocation6 [shape = 's32[1]{0}', space=sflag, size = 0x4, scoped, tag = 'scoped memory for tpu_custom_call.1']
    #allocation7 [shape = 'u8[1024]{0}', space=vmem, size = 0x400, scoped, tag = 'input window, operand 2, single buffered']
    #allocation8 [shape = 'u8[131072]{0}', space=vmem, size = 0x20000, scoped, tag = 'input window, operand 3, single buffered']
    #allocation9 [shape = 's32[1]{0}', space=sflag, size = 0x4, scoped, tag = 'scoped memory for tpu_custom_call.1']
    #allocation10 [shape = 'u8[65536]{0}', space=vmem, size = 0x10000, scoped, tag = 'input window, operand 5, single buffered']
    #allocation11 [shape = 'u8[8192]{0}', space=vmem, size = 0x2000, scoped, tag = 'output window, operand 0, single buffered']
    %12 = vsyncpa [#allocation3], 0
    %13 = vsyncpa [#allocation6], 0
    %14 = vsyncpa [#allocation9], 0
    %15 = vsyncpa [#allocation4], 0
    // Predicated region
    $region2: #{tpu_custom_call.1} parent=1 // pred_check
      _
    $region3: #{tpu_custom_call.1} parent=1 // pred_check_branch
      %17 = sbr.rel (0) target = $region5
    $region4: #{tpu_custom_call.1} parent=1 // pred_region
      %19 = vsyncadd [#allocation3], 0
      %s20 = sshll.u32 %s0, 4
      %s21 = int_to_ptr.hbm [resolvable:$true] %s20
      %s22 = sshll.u32 [#allocation2], 4
      %s23 = int_to_ptr.vmem [resolvable:$true] %s22
      %28 = dma.hbm_to_vmem [thread:$0]  %s21, 512, %s23, [#allocation3], 256, 256, 16
    $region5: #{tpu_custom_call.1} parent=1 // pred_fallthru
      _
    // Predicated region
    $region6: #{tpu_custom_call.1} parent=1 // pred_check
      _
    $region7: #{tpu_custom_call.1} parent=1 // pred_check_branch
      %30 = sbr.rel (0) target = $region9
    $region8: #{tpu_custom_call.1} parent=1 // pred_region
      %32 = vsyncadd [#allocation6], 0
      %s33 = sshll.u32 %s1, 4
      %s34 = int_to_ptr.hbm [resolvable:$true] %s33
      %s35 = sshll.u32 [#allocation5], 4
      %s36 = int_to_ptr.vmem [resolvable:$true] %s35
      %41 = dma.hbm_to_vmem [thread:$0]  %s34, 4096, %s36, [#allocation6], 128, 128, 8
    $region9: #{tpu_custom_call.1} parent=1 // pred_fallthru
      _
    // Predicated region
    $region10: #{tpu_custom_call.1} parent=1 // pred_check
      _
    $region11: #{tpu_custom_call.1} parent=1 // pred_check_branch
      %43 = sbr.rel (0) target = $region13
    $region12: #{tpu_custom_call.1} parent=1 // pred_region
      %45 = vsyncadd [#allocation6], 0
      %s47 = sshll.u32 %s2, 4
      %s48 = int_to_ptr.hbm [resolvable:$true] %s47
      %s49 = sshll.u32 [#allocation7], 4
      %s50 = int_to_ptr.vmem [resolvable:$true] %s49
      %52 = dma.hbm_to_vmem [thread:$0]  %s48, 32, %s50, [#allocation6]
    $region13: #{tpu_custom_call.1} parent=1 // pred_fallthru
      _
    // Predicated region
    $region14: #{tpu_custom_call.1} parent=1 // pred_check
      _
    $region15: #{tpu_custom_call.1} parent=1 // pred_check_branch
      %54 = sbr.rel (0) target = $region17
    $region16: #{tpu_custom_call.1} parent=1 // pred_region
      %56 = vsyncadd [#allocation9], 0
      %s57 = sshll.u32 %s3, 4
      %s58 = int_to_ptr.hbm [resolvable:$true] %s57
      %s59 = sshll.u32 [#allocation8], 4
      %s60 = int_to_ptr.vmem [resolvable:$true] %s59
      %65 = dma.hbm_to_vmem [thread:$0]  %s58, 4096, %s60, [#allocation9], 128, 128, 8
    $region17: #{tpu_custom_call.1} parent=1 // pred_fallthru
      _
    // Predicated region
    $region18: #{tpu_custom_call.1} parent=1 // pred_check
      _
    $region19: #{tpu_custom_call.1} parent=1 // pred_check_branch
      %67 = sbr.rel (0) target = $region21
    $region20: #{tpu_custom_call.1} parent=1 // pred_region
      _
    $region21: #{tpu_custom_call.1} parent=1 // pred_fallthru
      _
    // Predicated region
    $region22: #{tpu_custom_call.1} parent=1 // pred_check
      _
    $region23: #{tpu_custom_call.1} parent=1 // pred_check_branch
      %69 = sbr.rel (0) target = $region25
    $region24: #{tpu_custom_call.1} parent=1 // pred_region
      %71 = vsyncadd [#allocation9], 0
      %s72 = sshll.u32 %s5, 4
      %s73 = int_to_ptr.hbm [resolvable:$true] %s72
      %s74 = sshll.u32 [#allocation10], 4
      %s75 = int_to_ptr.vmem [resolvable:$true] %s74
      %80 = dma.hbm_to_vmem [thread:$0]  %s73, 2048, %s75, [#allocation9], 64, 64, 4
    $region25: #{tpu_custom_call.1} parent=1 // pred_fallthru
      _
    // Predicated region
    $region26: #{tpu_custom_call.1} parent=1 // pred_check
      _
    $region27: #{tpu_custom_call.1} parent=1 // pred_check_branch
      %82 = sbr.rel (0) target = $region29
    $region28: #{tpu_custom_call.1} parent=1 // pred_region
      _
    $region29: #{tpu_custom_call.1} parent=1 // pred_fallthru
      _
    // Predicated region
    $region30: #{tpu_custom_call.1} parent=1 // pred_check
      _
    $region31: #{tpu_custom_call.1} parent=1 // pred_check_branch
      %84 = sbr.rel (0) target = $region33
    $region32: #{tpu_custom_call.1} parent=1 // pred_region
      %86 = dma.done [#allocation3], 512
    $region33: #{tpu_custom_call.1} parent=1 // pred_fallthru
      _
    // Predicated region
    $region34: #{tpu_custom_call.1} parent=1 // pred_check
      _
    $region35: #{tpu_custom_call.1} parent=1 // pred_check_branch
      %88 = sbr.rel (0) target = $region37
    $region36: #{tpu_custom_call.1} parent=1 // pred_region
      %90 = dma.done [#allocation6], 4096
    $region37: #{tpu_custom_call.1} parent=1 // pred_fallthru
      _
    // Predicated region
    $region38: #{tpu_custom_call.1} parent=1 // pred_check
      _
    $region39: #{tpu_custom_call.1} parent=1 // pred_check_branch
      %92 = sbr.rel (0) target = $region41
    $region40: #{tpu_custom_call.1} parent=1 // pred_region
      %94 = dma.done [#allocation6], 32
    $region41: #{tpu_custom_call.1} parent=1 // pred_fallthru
      _
    // Predicated region
    $region42: #{tpu_custom_call.1} parent=1 // pred_check
      _
    $region43: #{tpu_custom_call.1} parent=1 // pred_check_branch
      %96 = sbr.rel (0) target = $region45
    $region44: #{tpu_custom_call.1} parent=1 // pred_region
      %98 = dma.done [#allocation9], 4096
    $region45: #{tpu_custom_call.1} parent=1 // pred_fallthru
      _
    // Predicated region
    $region46: #{tpu_custom_call.1} parent=1 // pred_check
      _
    $region47: #{tpu_custom_call.1} parent=1 // pred_check_branch
      %100 = sbr.rel (0) target = $region49
    $region48: #{tpu_custom_call.1} parent=1 // pred_region
      %102 = dma.done [#allocation9], 2048
    $region49: #{tpu_custom_call.1} parent=1 // pred_fallthru
      _
    %v103 = vld [vmem:[#allocation2] sm:$0xff]
    %v104 = vld [vmem:[#allocation2 + $0x8] sm:$0xff]
    %v105 = vld [vmem:[#allocation2 + $0x10] sm:$0xff]
    %v106 = vld [vmem:[#allocation2 + $0x18] sm:$0xff]
    %v107 = vpack.c.bf16 %v105, %v103
    %v108 = vpack.c.bf16 %v106, %v104
    %v109 = vld [vmem:[#allocation5] sm:$0xff]
    %v110 = vld [vmem:[#allocation5 + $0x8] sm:$0xff]
    %v111 = vld [vmem:[#allocation5 + $0x10] sm:$0xff]
    %v112 = vld [vmem:[#allocation5 + $0x18] sm:$0xff]
    %v113 = vld [vmem:[#allocation5 + $0x20] sm:$0xff]
    %v114 = vld [vmem:[#allocation5 + $0x28] sm:$0xff]
    %v115 = vld [vmem:[#allocation5 + $0x30] sm:$0xff]
    %v116 = vld [vmem:[#allocation5 + $0x38] sm:$0xff]
    %v117 = vld [vmem:[#allocation5 + $0x40] sm:$0xff]
    %v118 = vld [vmem:[#allocation5 + $0x48] sm:$0xff]
    %v119 = vld [vmem:[#allocation5 + $0x50] sm:$0xff]
    %v120 = vld [vmem:[#allocation5 + $0x58] sm:$0xff]
    %v121 = vld [vmem:[#allocation5 + $0x60] sm:$0xff]
    %v122 = vld [vmem:[#allocation5 + $0x68] sm:$0xff]
    %v123 = vld [vmem:[#allocation5 + $0x70] sm:$0xff]
    %v124 = vld [vmem:[#allocation5 + $0x78] sm:$0xff]
    %v125 = vld [vmem:[#allocation5 + $0x80] sm:$0xff]
    %v126 = vld [vmem:[#allocation5 + $0x88] sm:$0xff]
    %v127 = vld [vmem:[#allocation5 + $0x90] sm:$0xff]
    %v128 = vld [vmem:[#allocation5 + $0x98] sm:$0xff]
    %v129 = vld [vmem:[#allocation5 + $0xa0] sm:$0xff]
    %v130 = vld [vmem:[#allocation5 + $0xa8] sm:$0xff]
    %v131 = vld [vmem:[#allocation5 + $0xb0] sm:$0xff]
    %v132 = vld [vmem:[#allocation5 + $0xb8] sm:$0xff]
    %v133 = vld [vmem:[#allocation5 + $0xc0] sm:$0xff]
    %v134 = vld [vmem:[#allocation5 + $0xc8] sm:$0xff]
    %v135 = vld [vmem:[#allocation5 + $0xd0] sm:$0xff]
    %v136 = vld [vmem:[#allocation5 + $0xd8] sm:$0xff]
    %v137 = vld [vmem:[#allocation5 + $0xe0] sm:$0xff]
    %v138 = vld [vmem:[#allocation5 + $0xe8] sm:$0xff]
    %v139 = vld [vmem:[#allocation5 + $0xf0] sm:$0xff]
    %v140 = vld [vmem:[#allocation5 + $0xf8] sm:$0xff]
    %v141 = vld [vmem:[#allocation7] sm:$0x3]
    %v143 = vperm.slane %v141, 0
    %v144 = vperm.slane %v141, 1
    %v179 = vunpack.c.l.b16 %v109
    %v180 = vunpack.c.h.b16 %v109
    %v181 = vunpack.c.l.b16 %v110
    %v182 = vunpack.c.h.b16 %v110
    %v183 = vunpack.c.l.b16 %v111
    %v184 = vunpack.c.h.b16 %v111
    %v185 = vunpack.c.l.b16 %v112
    %v186 = vunpack.c.h.b16 %v112
    %v187 = vunpack.c.l.b16 %v113
    %v188 = vunpack.c.h.b16 %v113
    %v189 = vunpack.c.l.b16 %v114
    %v190 = vunpack.c.h.b16 %v114
    %v191 = vunpack.c.l.b16 %v115
    %v192 = vunpack.c.h.b16 %v115
    %v193 = vunpack.c.l.b16 %v116
    %v194 = vunpack.c.h.b16 %v116
    %v195 = vunpack.c.l.b16 %v117
    %v196 = vunpack.c.h.b16 %v117
    %v197 = vunpack.c.l.b16 %v118
    %v198 = vunpack.c.h.b16 %v118
    %v199 = vunpack.c.l.b16 %v119
    %v200 = vunpack.c.h.b16 %v119
    %v201 = vunpack.c.l.b16 %v120
    %v202 = vunpack.c.h.b16 %v120
    %v203 = vunpack.c.l.b16 %v121
    %v204 = vunpack.c.h.b16 %v121
    %v205 = vunpack.c.l.b16 %v122
    %v206 = vunpack.c.h.b16 %v122
    %v207 = vunpack.c.l.b16 %v123
    %v208 = vunpack.c.h.b16 %v123
    %v209 = vunpack.c.l.b16 %v124
    %v210 = vunpack.c.h.b16 %v124
    %v211 = vunpack.c.l.b16 %v125
    %v212 = vunpack.c.h.b16 %v125
    %v213 = vunpack.c.l.b16 %v126
    %v214 = vunpack.c.h.b16 %v126
    %v215 = vunpack.c.l.b16 %v127
    %v216 = vunpack.c.h.b16 %v127
    %v217 = vunpack.c.l.b16 %v128
    %v218 = vunpack.c.h.b16 %v128
    %v219 = vunpack.c.l.b16 %v129
    %v220 = vunpack.c.h.b16 %v129
    %v221 = vunpack.c.l.b16 %v130
    %v222 = vunpack.c.h.b16 %v130
    %v223 = vunpack.c.l.b16 %v131
    %v224 = vunpack.c.h.b16 %v131
    %v225 = vunpack.c.l.b16 %v132
    %v226 = vunpack.c.h.b16 %v132
    %v227 = vunpack.c.l.b16 %v133
    %v228 = vunpack.c.h.b16 %v133
    %v229 = vunpack.c.l.b16 %v134
    %v230 = vunpack.c.h.b16 %v134
    %v231 = vunpack.c.l.b16 %v135
    %v232 = vunpack.c.h.b16 %v135
    %v233 = vunpack.c.l.b16 %v136
    %v234 = vunpack.c.h.b16 %v136
    %v235 = vunpack.c.l.b16 %v137
    %v236 = vunpack.c.h.b16 %v137
    %v237 = vunpack.c.l.b16 %v138
    %v238 = vunpack.c.h.b16 %v138
    %v239 = vunpack.c.l.b16 %v139
    %v240 = vunpack.c.h.b16 %v139
    %v241 = vunpack.c.l.b16 %v140
    %v242 = vunpack.c.h.b16 %v140
    %v243 = vpack.c.b16 %v181, %v179
    %v244 = vpack.c.b16 %v182, %v180
    %v245 = vpack.c.b16 %v185, %v183
    %v246 = vpack.c.b16 %v186, %v184
    %v247 = vpack.c.b16 %v189, %v187
    %v248 = vpack.c.b16 %v190, %v188
    %v249 = vpack.c.b16 %v193, %v191
    %v250 = vpack.c.b16 %v194, %v192
    %v251 = vpack.c.b16 %v197, %v195
    %v252 = vpack.c.b16 %v198, %v196
    %v253 = vpack.c.b16 %v201, %v199
    %v254 = vpack.c.b16 %v202, %v200
    %v255 = vpack.c.b16 %v205, %v203
    %v256 = vpack.c.b16 %v206, %v204
    %v257 = vpack.c.b16 %v209, %v207
    %v258 = vpack.c.b16 %v210, %v208
    %v259 = vpack.c.b16 %v213, %v211
    %v260 = vpack.c.b16 %v214, %v212
    %v261 = vpack.c.b16 %v217, %v215
    %v262 = vpack.c.b16 %v218, %v216
    %v263 = vpack.c.b16 %v221, %v219
    %v264 = vpack.c.b16 %v222, %v220
    %v265 = vpack.c.b16 %v225, %v223
    %v266 = vpack.c.b16 %v226, %v224
    %v267 = vpack.c.b16 %v229, %v227
    %v268 = vpack.c.b16 %v230, %v228
    %v269 = vpack.c.b16 %v233, %v231
    %v270 = vpack.c.b16 %v234, %v232
    %v271 = vpack.c.b16 %v237, %v235
    %v272 = vpack.c.b16 %v238, %v236
    %v273 = vpack.c.b16 %v241, %v239
    %v274 = vpack.c.b16 %v242, %v240
    %307 = vmatpush.bf16.msra.mxu0 %v257
    %308 = vmatpush.bf16.msra.mxu0 %v255
    %309 = vmatpush.bf16.msra.mxu0 %v253
    %310 = vmatpush.bf16.msra.mxu0 %v251
    %311 = vmatpush.bf16.msra.mxu0 %v249
    %312 = vmatpush.bf16.msra.mxu0 %v247
    %313 = vmatpush.bf16.msra.mxu0 %v245
    %314 = vmatpush.bf16.msra.mxu0 %v243
    %315 = vmatmul.bf16.gmra.mxu0 %v107
    %v316 = vpop.f32.mrf.mxu0
    %v317 = vadd.f32 %v143, %v316
    %v318 = vpop.f32.mrf.mxu0
    %v319 = vadd.f32 %v143, %v318
    %320 = vdwg.mxu0
    %321 = vmatpush.bf16.msra.mxu0 %v273
    %322 = vmatpush.bf16.msra.mxu0 %v271
    %323 = vmatpush.bf16.msra.mxu0 %v269
    %324 = vmatpush.bf16.msra.mxu0 %v267
    %325 = vmatpush.bf16.msra.mxu0 %v265
    %326 = vmatpush.bf16.msra.mxu0 %v263
    %327 = vmatpush.bf16.msra.mxu0 %v261
    %328 = vmatpush.bf16.msra.mxu0 %v259
    %329 = vmatmul.bf16.gmra.mxu0 %v108
    %v330 = vpop.f32.mrf.mxu0
    %v331 = vadd.f32 %v317, %v330
    %v332 = vpop.f32.mrf.mxu0
    %v333 = vadd.f32 %v319, %v332
    %334 = vdwg.mxu0
    %335 = vmatpush.bf16.msra.mxu0 %v258
    %336 = vmatpush.bf16.msra.mxu0 %v256
    %337 = vmatpush.bf16.msra.mxu0 %v254
    %338 = vmatpush.bf16.msra.mxu0 %v252
    %339 = vmatpush.bf16.msra.mxu0 %v250
    %340 = vmatpush.bf16.msra.mxu0 %v248
    %341 = vmatpush.bf16.msra.mxu0 %v246
    %342 = vmatpush.bf16.msra.mxu0 %v244
    %343 = vmatmul.bf16.gmra.mxu0 %v107
    %v344 = vpop.f32.mrf.mxu0
    %v345 = vadd.f32 %v144, %v344
    %v346 = vpop.f32.mrf.mxu0
    %v347 = vadd.f32 %v144, %v346
    %348 = vdwg.mxu0
    %349 = vmatpush.bf16.msra.mxu0 %v274
    %350 = vmatpush.bf16.msra.mxu0 %v272
    %351 = vmatpush.bf16.msra.mxu0 %v270
    %352 = vmatpush.bf16.msra.mxu0 %v268
    %353 = vmatpush.bf16.msra.mxu0 %v266
    %354 = vmatpush.bf16.msra.mxu0 %v264
    %355 = vmatpush.bf16.msra.mxu0 %v262
    %356 = vmatpush.bf16.msra.mxu0 %v260
    %357 = vmatmul.bf16.gmra.mxu0 %v108
    %v358 = vpop.f32.mrf.mxu0
    %v359 = vadd.f32 %v345, %v358
    %v360 = vpop.f32.mrf.mxu0
    %v361 = vadd.f32 %v347, %v360
    %362 = vdwg.mxu0
    %v363 = vmax.f32 %v331, 0.0
    %v364 = vmax.f32 %v359, 0.0
    %v365 = vmax.f32 %v333, 0.0
    %v366 = vmax.f32 %v361, 0.0
    %v367 = vpack.c.bf16 %v365, %v363
    %v368 = vpack.c.bf16 %v366, %v364
    %v369 = vld [vmem:[#allocation8] sm:$0xff]
    %v370 = vld [vmem:[#allocation8 + $0x8] sm:$0xff]
    %v371 = vld [vmem:[#allocation8 + $0x10] sm:$0xff]
    %v372 = vld [vmem:[#allocation8 + $0x18] sm:$0xff]
    %v373 = vld [vmem:[#allocation8 + $0x20] sm:$0xff]
    %v374 = vld [vmem:[#allocation8 + $0x28] sm:$0xff]
    %v375 = vld [vmem:[#allocation8 + $0x30] sm:$0xff]
    %v376 = vld [vmem:[#allocation8 + $0x38] sm:$0xff]
    %v377 = vld [vmem:[#allocation8 + $0x40] sm:$0xff]
    %v378 = vld [vmem:[#allocation8 + $0x48] sm:$0xff]
    %v379 = vld [vmem:[#allocation8 + $0x50] sm:$0xff]
    %v380 = vld [vmem:[#allocation8 + $0x58] sm:$0xff]
    %v381 = vld [vmem:[#allocation8 + $0x60] sm:$0xff]
    %v382 = vld [vmem:[#allocation8 + $0x68] sm:$0xff]
    %v383 = vld [vmem:[#allocation8 + $0x70] sm:$0xff]
    %v384 = vld [vmem:[#allocation8 + $0x78] sm:$0xff]
    %v385 = vld [vmem:[#allocation8 + $0x80] sm:$0xff]
    %v386 = vld [vmem:[#allocation8 + $0x88] sm:$0xff]
    %v387 = vld [vmem:[#allocation8 + $0x90] sm:$0xff]
    %v388 = vld [vmem:[#allocation8 + $0x98] sm:$0xff]
    %v389 = vld [vmem:[#allocation8 + $0xa0] sm:$0xff]
    %v390 = vld [vmem:[#allocation8 + $0xa8] sm:$0xff]
    %v391 = vld [vmem:[#allocation8 + $0xb0] sm:$0xff]
    %v392 = vld [vmem:[#allocation8 + $0xb8] sm:$0xff]
    %v393 = vld [vmem:[#allocation8 + $0xc0] sm:$0xff]
    %v394 = vld [vmem:[#allocation8 + $0xc8] sm:$0xff]
    %v395 = vld [vmem:[#allocation8 + $0xd0] sm:$0xff]
    %v396 = vld [vmem:[#allocation8 + $0xd8] sm:$0xff]
    %v397 = vld [vmem:[#allocation8 + $0xe0] sm:$0xff]
    %v398 = vld [vmem:[#allocation8 + $0xe8] sm:$0xff]
    %v399 = vld [vmem:[#allocation8 + $0xf0] sm:$0xff]
    %v400 = vld [vmem:[#allocation8 + $0xf8] sm:$0xff]
    %v401 = vld [vmem:[%s4] sm:$0x3]
    %v403 = vperm.slane %v401, 0
    %v404 = vperm.slane %v401, 1
    %v439 = vunpack.c.l.b16 %v369
    %v440 = vunpack.c.h.b16 %v369
    %v441 = vunpack.c.l.b16 %v370
    %v442 = vunpack.c.h.b16 %v370
    %v443 = vunpack.c.l.b16 %v371
    %v444 = vunpack.c.h.b16 %v371
    %v445 = vunpack.c.l.b16 %v372
    %v446 = vunpack.c.h.b16 %v372
    %v447 = vunpack.c.l.b16 %v373
    %v448 = vunpack.c.h.b16 %v373
    %v449 = vunpack.c.l.b16 %v374
    %v450 = vunpack.c.h.b16 %v374
    %v451 = vunpack.c.l.b16 %v375
    %v452 = vunpack.c.h.b16 %v375
    %v453 = vunpack.c.l.b16 %v376
    %v454 = vunpack.c.h.b16 %v376
    %v455 = vunpack.c.l.b16 %v377
    %v456 = vunpack.c.h.b16 %v377
    %v457 = vunpack.c.l.b16 %v378
    %v458 = vunpack.c.h.b16 %v378
    %v459 = vunpack.c.l.b16 %v379
    %v460 = vunpack.c.h.b16 %v379
    %v461 = vunpack.c.l.b16 %v380
    %v462 = vunpack.c.h.b16 %v380
    %v463 = vunpack.c.l.b16 %v381
    %v464 = vunpack.c.h.b16 %v381
    %v465 = vunpack.c.l.b16 %v382
    %v466 = vunpack.c.h.b16 %v382
    %v467 = vunpack.c.l.b16 %v383
    %v468 = vunpack.c.h.b16 %v383
    %v469 = vunpack.c.l.b16 %v384
    %v470 = vunpack.c.h.b16 %v384
    %v471 = vunpack.c.l.b16 %v385
    %v472 = vunpack.c.h.b16 %v385
    %v473 = vunpack.c.l.b16 %v386
    %v474 = vunpack.c.h.b16 %v386
    %v475 = vunpack.c.l.b16 %v387
    %v476 = vunpack.c.h.b16 %v387
    %v477 = vunpack.c.l.b16 %v388
    %v478 = vunpack.c.h.b16 %v388
    %v479 = vunpack.c.l.b16 %v389
    %v480 = vunpack.c.h.b16 %v389
    %v481 = vunpack.c.l.b16 %v390
    %v482 = vunpack.c.h.b16 %v390
    %v483 = vunpack.c.l.b16 %v391
    %v484 = vunpack.c.h.b16 %v391
    %v485 = vunpack.c.l.b16 %v392
    %v486 = vunpack.c.h.b16 %v392
    %v487 = vunpack.c.l.b16 %v393
    %v488 = vunpack.c.h.b16 %v393
    %v489 = vunpack.c.l.b16 %v394
    %v490 = vunpack.c.h.b16 %v394
    %v491 = vunpack.c.l.b16 %v395
    %v492 = vunpack.c.h.b16 %v395
    %v493 = vunpack.c.l.b16 %v396
    %v494 = vunpack.c.h.b16 %v396
    %v495 = vunpack.c.l.b16 %v397
    %v496 = vunpack.c.h.b16 %v397
    %v497 = vunpack.c.l.b16 %v398
    %v498 = vunpack.c.h.b16 %v398
    %v499 = vunpack.c.l.b16 %v399
    %v500 = vunpack.c.h.b16 %v399
    %v501 = vunpack.c.l.b16 %v400
    %v502 = vunpack.c.h.b16 %v400
    %v503 = vpack.c.b16 %v441, %v439
    %v504 = vpack.c.b16 %v442, %v440
    %v505 = vpack.c.b16 %v445, %v443
    %v506 = vpack.c.b16 %v446, %v444
    %v507 = vpack.c.b16 %v449, %v447
    %v508 = vpack.c.b16 %v450, %v448
    %v509 = vpack.c.b16 %v453, %v451
    %v510 = vpack.c.b16 %v454, %v452
    %v511 = vpack.c.b16 %v457, %v455
    %v512 = vpack.c.b16 %v458, %v456
    %v513 = vpack.c.b16 %v461, %v459
    %v514 = vpack.c.b16 %v462, %v460
    %v515 = vpack.c.b16 %v465, %v463
    %v516 = vpack.c.b16 %v466, %v464
    %v517 = vpack.c.b16 %v469, %v467
    %v518 = vpack.c.b16 %v470, %v468
    %v519 = vpack.c.b16 %v473, %v471
    %v520 = vpack.c.b16 %v474, %v472
    %v521 = vpack.c.b16 %v477, %v475
    %v522 = vpack.c.b16 %v478, %v476
    %v523 = vpack.c.b16 %v481, %v479
    %v524 = vpack.c.b16 %v482, %v480
    %v525 = vpack.c.b16 %v485, %v483
    %v526 = vpack.c.b16 %v486, %v484
    %v527 = vpack.c.b16 %v489, %v487
    %v528 = vpack.c.b16 %v490, %v488
    %v529 = vpack.c.b16 %v493, %v491
    %v530 = vpack.c.b16 %v494, %v492
    %v531 = vpack.c.b16 %v497, %v495
    %v532 = vpack.c.b16 %v498, %v496
    %v533 = vpack.c.b16 %v501, %v499
    %v534 = vpack.c.b16 %v502, %v500
    %567 = vmatpush.bf16.msra.mxu0 %v517
    %568 = vmatpush.bf16.msra.mxu0 %v515
    %569 = vmatpush.bf16.msra.mxu0 %v513
    %570 = vmatpush.bf16.msra.mxu0 %v511
    %571 = vmatpush.bf16.msra.mxu0 %v509
    %572 = vmatpush.bf16.msra.mxu0 %v507
    %573 = vmatpush.bf16.msra.mxu0 %v505
    %574 = vmatpush.bf16.msra.mxu0 %v503
    %575 = vmatmul.bf16.gmra.mxu0 %v367
    %v576 = vpop.f32.mrf.mxu0
    %v577 = vadd.f32 %v403, %v576
    %v578 = vpop.f32.mrf.mxu0
    %v579 = vadd.f32 %v403, %v578
    %580 = vdwg.mxu0
    %581 = vmatpush.bf16.msra.mxu0 %v533
    %582 = vmatpush.bf16.msra.mxu0 %v531
    %583 = vmatpush.bf16.msra.mxu0 %v529
    %584 = vmatpush.bf16.msra.mxu0 %v527
    %585 = vmatpush.bf16.msra.mxu0 %v525
    %586 = vmatpush.bf16.msra.mxu0 %v523
    %587 = vmatpush.bf16.msra.mxu0 %v521
    %588 = vmatpush.bf16.msra.mxu0 %v519
    %589 = vmatmul.bf16.gmra.mxu0 %v368
    %v590 = vpop.f32.mrf.mxu0
    %v591 = vadd.f32 %v577, %v590
    %v592 = vpop.f32.mrf.mxu0
    %v593 = vadd.f32 %v579, %v592
    %594 = vdwg.mxu0
    %595 = vmatpush.bf16.msra.mxu0 %v518
    %596 = vmatpush.bf16.msra.mxu0 %v516
    %597 = vmatpush.bf16.msra.mxu0 %v514
    %598 = vmatpush.bf16.msra.mxu0 %v512
    %599 = vmatpush.bf16.msra.mxu0 %v510
    %600 = vmatpush.bf16.msra.mxu0 %v508
    %601 = vmatpush.bf16.msra.mxu0 %v506
    %602 = vmatpush.bf16.msra.mxu0 %v504
    %603 = vmatmul.bf16.gmra.mxu0 %v367
    %v604 = vpop.f32.mrf.mxu0
    %v605 = vadd.f32 %v404, %v604
    %v606 = vpop.f32.mrf.mxu0
    %v607 = vadd.f32 %v404, %v606
    %608 = vdwg.mxu0
    %609 = vmatpush.bf16.msra.mxu0 %v534
    %610 = vmatpush.bf16.msra.mxu0 %v532
    %611 = vmatpush.bf16.msra.mxu0 %v530
    %612 = vmatpush.bf16.msra.mxu0 %v528
    %613 = vmatpush.bf16.msra.mxu0 %v526
    %614 = vmatpush.bf16.msra.mxu0 %v524
    %615 = vmatpush.bf16.msra.mxu0 %v522
    %616 = vmatpush.bf16.msra.mxu0 %v520
    %617 = vmatmul.bf16.gmra.mxu0 %v368
    %v618 = vpop.f32.mrf.mxu0
    %v619 = vadd.f32 %v605, %v618
    %v620 = vpop.f32.mrf.mxu0
    %v621 = vadd.f32 %v607, %v620
    %622 = vdwg.mxu0
    %v623 = vmax.f32 %v591, 0.0
    %v624 = vmax.f32 %v619, 0.0
    %v625 = vmax.f32 %v593, 0.0
    %v626 = vmax.f32 %v621, 0.0
    %v627 = vpack.c.bf16 %v625, %v623
    %v628 = vpack.c.bf16 %v626, %v624
    %v629 = vld [vmem:[#allocation10] sm:$0xf]
    %v630 = vld [vmem:[#allocation10 + $0x4] sm:$0xf]
    %v631 = vld [vmem:[#allocation10 + $0x8] sm:$0xf]
    %v632 = vld [vmem:[#allocation10 + $0xc] sm:$0xf]
    %v633 = vld [vmem:[#allocation10 + $0x10] sm:$0xf]
    %v634 = vld [vmem:[#allocation10 + $0x14] sm:$0xf]
    %v635 = vld [vmem:[#allocation10 + $0x18] sm:$0xf]
    %v636 = vld [vmem:[#allocation10 + $0x1c] sm:$0xf]
    %v637 = vld [vmem:[#allocation10 + $0x20] sm:$0xf]
    %v638 = vld [vmem:[#allocation10 + $0x24] sm:$0xf]
    %v639 = vld [vmem:[#allocation10 + $0x28] sm:$0xf]
    %v640 = vld [vmem:[#allocation10 + $0x2c] sm:$0xf]
    %v641 = vld [vmem:[#allocation10 + $0x30] sm:$0xf]
    %v642 = vld [vmem:[#allocation10 + $0x34] sm:$0xf]
    %v643 = vld [vmem:[#allocation10 + $0x38] sm:$0xf]
    %v644 = vld [vmem:[#allocation10 + $0x3c] sm:$0xf]
    %v645 = vld [vmem:[#allocation10 + $0x40] sm:$0xf]
    %v646 = vld [vmem:[#allocation10 + $0x44] sm:$0xf]
    %v647 = vld [vmem:[#allocation10 + $0x48] sm:$0xf]
    %v648 = vld [vmem:[#allocation10 + $0x4c] sm:$0xf]
    %v649 = vld [vmem:[#allocation10 + $0x50] sm:$0xf]
    %v650 = vld [vmem:[#allocation10 + $0x54] sm:$0xf]
    %v651 = vld [vmem:[#allocation10 + $0x58] sm:$0xf]
    %v652 = vld [vmem:[#allocation10 + $0x5c] sm:$0xf]
    %v653 = vld [vmem:[#allocation10 + $0x60] sm:$0xf]
    %v654 = vld [vmem:[#allocation10 + $0x64] sm:$0xf]
    %v655 = vld [vmem:[#allocation10 + $0x68] sm:$0xf]
    %v656 = vld [vmem:[#allocation10 + $0x6c] sm:$0xf]
    %v657 = vld [vmem:[#allocation10 + $0x70] sm:$0xf]
    %v658 = vld [vmem:[#allocation10 + $0x74] sm:$0xf]
    %v659 = vld [vmem:[#allocation10 + $0x78] sm:$0xf]
    %v660 = vld [vmem:[#allocation10 + $0x7c] sm:$0xf]
    %v661 = vld [vmem:[%s6] sm:$0x1]
    %v663 = vperm.slane %v661, 0
    %v697 = vunpack.c.l.b16 %v629
    %v698 = vunpack.c.l.b16 %v630
    %v699 = vunpack.c.l.b16 %v631
    %v700 = vunpack.c.l.b16 %v632
    %v701 = vunpack.c.l.b16 %v633
    %v702 = vunpack.c.l.b16 %v634
    %v703 = vunpack.c.l.b16 %v635
    %v704 = vunpack.c.l.b16 %v636
    %v705 = vunpack.c.l.b16 %v637
    %v706 = vunpack.c.l.b16 %v638
    %v707 = vunpack.c.l.b16 %v639
    %v708 = vunpack.c.l.b16 %v640
    %v709 = vunpack.c.l.b16 %v641
    %v710 = vunpack.c.l.b16 %v642
    %v711 = vunpack.c.l.b16 %v643
    %v712 = vunpack.c.l.b16 %v644
    %v713 = vunpack.c.l.b16 %v645
    %v714 = vunpack.c.l.b16 %v646
    %v715 = vunpack.c.l.b16 %v647
    %v716 = vunpack.c.l.b16 %v648
    %v717 = vunpack.c.l.b16 %v649
    %v718 = vunpack.c.l.b16 %v650
    %v719 = vunpack.c.l.b16 %v651
    %v720 = vunpack.c.l.b16 %v652
    %v721 = vunpack.c.l.b16 %v653
    %v722 = vunpack.c.l.b16 %v654
    %v723 = vunpack.c.l.b16 %v655
    %v724 = vunpack.c.l.b16 %v656
    %v725 = vunpack.c.l.b16 %v657
    %v726 = vunpack.c.l.b16 %v658
    %v727 = vunpack.c.l.b16 %v659
    %v728 = vunpack.c.l.b16 %v660
    %v729 = vpack.c.b16 %v698, %v697
    %v730 = vpack.c.b16 %v700, %v699
    %v731 = vpack.c.b16 %v702, %v701
    %v732 = vpack.c.b16 %v704, %v703
    %v733 = vpack.c.b16 %v706, %v705
    %v734 = vpack.c.b16 %v708, %v707
    %v735 = vpack.c.b16 %v710, %v709
    %v736 = vpack.c.b16 %v712, %v711
    %v737 = vpack.c.b16 %v714, %v713
    %v738 = vpack.c.b16 %v716, %v715
    %v739 = vpack.c.b16 %v718, %v717
    %v740 = vpack.c.b16 %v720, %v719
    %v741 = vpack.c.b16 %v722, %v721
    %v742 = vpack.c.b16 %v724, %v723
    %v743 = vpack.c.b16 %v726, %v725
    %v744 = vpack.c.b16 %v728, %v727
    %761 = vmatpush.bf16.msra.mxu0 %v736
    %762 = vmatpush.bf16.msra.mxu0 %v735
    %763 = vmatpush.bf16.msra.mxu0 %v734
    %764 = vmatpush.bf16.msra.mxu0 %v733
    %765 = vmatpush.bf16.msra.mxu0 %v732
    %766 = vmatpush.bf16.msra.mxu0 %v731
    %767 = vmatpush.bf16.msra.mxu0 %v730
    %768 = vmatpush.bf16.msra.mxu0 %v729
    %769 = vmatmul.bf16.gmra.mxu0 %v627
    %v770 = vpop.f32.mrf.mxu0
    %v771 = vadd.f32 %v663, %v770
    %v772 = vpop.f32.mrf.mxu0
    %v773 = vadd.f32 %v663, %v772
    %774 = vdwg.mxu0
    %775 = vmatpush.bf16.msra.mxu0 %v744
    %776 = vmatpush.bf16.msra.mxu0 %v743
    %777 = vmatpush.bf16.msra.mxu0 %v742
    %778 = vmatpush.bf16.msra.mxu0 %v741
    %779 = vmatpush.bf16.msra.mxu0 %v740
    %780 = vmatpush.bf16.msra.mxu0 %v739
    %781 = vmatpush.bf16.msra.mxu0 %v738
    %782 = vmatpush.bf16.msra.mxu0 %v737
    %783 = vmatmul.bf16.gmra.mxu0 %v628
    %v784 = vpop.f32.mrf.mxu0
    %v785 = vadd.f32 %v771, %v784
    %v786 = vpop.f32.mrf.mxu0
    %v787 = vadd.f32 %v773, %v786
    %788 = vdwg.mxu0
    %789 = vst [vmem:[#allocation11] sm:$0xff] %v785
    %790 = vst [vmem:[#allocation11 + $0x8] sm:$0xff] %v787
    // Predicated region
    $region50: #{tpu_custom_call.1} parent=1 // pred_check
      _
    $region51: #{tpu_custom_call.1} parent=1 // pred_check_branch
      %792 = sbr.rel (0) target = $region53
    $region52: #{tpu_custom_call.1} parent=1 // pred_region
      %794 = vsyncadd [#allocation4], 0
      %s795 = sshll.u32 [#allocation11], 4
      %s796 = int_to_ptr.vmem [resolvable:$true] %s795
      %s797 = sshll.u32 %s7, 4
      %s798 = int_to_ptr.hbm [resolvable:$true] %s797
      %803 = dma.vmem_to_hbm [thread:$0]  %s796, 256, %s798, [#allocation4], 128, 128, 8
    $region53: #{tpu_custom_call.1} parent=1 // pred_fallthru
      _
    // Predicated region
    $region54: #{tpu_custom_call.1} parent=1 // pred_check
      _
    $region55: #{tpu_custom_call.1} parent=1 // pred_check_branch
      %805 = sbr.rel (0) target = $region57
    $region56: #{tpu_custom_call.1} parent=1 // pred_region
      %807 = dma.done [#allocation4], 256
    $region57: #{tpu_custom_call.1} parent=1 // pred_fallthru
      _
    %808 = vsyncpa [#allocation3], 1
    %809 = vsyncpa [#allocation6], 1
    %810 = vsyncpa [#allocation9], 1
    %811 = vsyncpa [#allocation4], 1

// kernel: tpu_custom_call.1
$region0: #{tpu_custom_call.1}
  #allocation0 [shape = 'u32[]', space=smem, size = 0x4, offset = 0x4, fixed_abs, tag = 'smem constant byte address 0x4 - core index']
  #allocation1 [shape = 'u32[72,128]{1,0:T(1,128)}', space=vmem, size = 0x9000, scoped, tag = 'internal scratch']
  %s0 = inlined_call_operand.hbm [shape: f32[16,256], index: 0, kind: input, shape index: {}]
  %s1 = inlined_call_operand.hbm [shape: bf16[256,256], index: 1, kind: input, shape index: {}]
  %s2 = inlined_call_operand.hbm [shape: f32[1,256], index: 2, kind: input, shape index: {}]
  %s3 = inlined_call_operand.hbm [shape: bf16[256,256], index: 3, kind: input, shape index: {}]
  %s4 = inlined_call_operand.vmem [shape: f32[1,256], index: 4, kind: input, shape index: {}]
  %s5 = inlined_call_operand.hbm [shape: bf16[256,128], index: 5, kind: input, shape index: {}]
  %s6 = inlined_call_operand.vmem [shape: f32[1,128], index: 6, kind: input, shape index: {}]
  %s7 = inlined_call_operand.hbm [shape: f32[16,128], index: 7, kind: output, shape index: {}]
  %s8 = sld [smem:[#allocation0]]
  $region58: #{tpu_custom_call.1} parent=0
    _
  %s10 = ssub.s32 1, %s8
  %s11 = scalar_select 0, %s10, %s8
  $region1: #{tpu_custom_call.1} parent=0
    #allocation2 [shape = 'u8[16384]{0}', space=vmem, size = 0x4000, scoped, tag = 'input window, operand 0, single buffered']
    #allocation3 [shape = 's32[1]{0}', space=sflag, size = 0x4, scoped, tag = 'scoped memory for tpu_custom_call.1']
    #allocation4 [shape = 's32[1]{0}', space=sflag, size = 0x4, scoped, tag = 'scoped memory for tpu_custom_call.1']
    #allocation5 [shape = 'u8[131072]{0}', space=vmem, size = 0x20000, scoped, tag = 'input window, operand 1, single buffered']
    #allocation6 [shape = 's32[1]{0}', space=sflag, size = 0x4, scoped, tag = 'scoped memory for tpu_custom_call.1']
    #allocation7 [shape = 'u8[1024]{0}', space=vmem, size = 0x400, scoped, tag = 'input window, operand 2, single buffered']
    #allocation8 [shape = 'u8[131072]{0}', space=vmem, size = 0x20000, scoped, tag = 'input window, operand 3, single buffered']
    #allocation9 [shape = 's32[1]{0}', space=sflag, size = 0x4, scoped, tag = 'scoped memory for tpu_custom_call.1']
    #allocation10 [shape = 'u8[65536]{0}', space=vmem, size = 0x10000, scoped, tag = 'input window, operand 5, single buffered']
    #allocation11 [shape = 'u8[8192]{0}', space=vmem, size = 0x2000, scoped, tag = 'output window, operand 0, single buffered']
    %12 = vsyncpa [#allocation3], 0
    %13 = vsyncpa [#allocation6], 0
    %14 = vsyncpa [#allocation9], 0
    %15 = vsyncpa [#allocation4], 0
    // Predicated region
    $region2: #{tpu_custom_call.1} parent=1 // pred_check
      _
    $region3: #{tpu_custom_call.1} parent=1 // pred_check_branch
      %17 = sbr.rel (0) target = $region5
    $region4: #{tpu_custom_call.1} parent=1 // pred_region
      %19 = vsyncadd [#allocation3], 0
      %s20 = sshll.u32 %s0, 4
      %s21 = int_to_ptr.hbm [resolvable:$true] %s20
      %s22 = sshll.u32 [#allocation2], 4
      %s23 = int_to_ptr.vmem [resolvable:$true] %s22
      %28 = dma.hbm_to_vmem [thread:$0]  %s21, 512, %s23, [#allocation3], 256, 256, 16
    $region5: #{tpu_custom_call.1} parent=1 // pred_fallthru
      _
    // Predicated region
    $region6: #{tpu_custom_call.1} parent=1 // pred_check
      _
    $region7: #{tpu_custom_call.1} parent=1 // pred_check_branch
      %30 = sbr.rel (0) target = $region9
    $region8: #{tpu_custom_call.1} parent=1 // pred_region
      %32 = vsyncadd [#allocation6], 0
      %s33 = sshll.u32 %s1, 4
      %s34 = int_to_ptr.hbm [resolvable:$true] %s33
      %s35 = sshll.u32 [#allocation5], 4
      %s36 = int_to_ptr.vmem [resolvable:$true] %s35
      %41 = dma.hbm_to_vmem [thread:$0]  %s34, 4096, %s36, [#allocation6], 128, 128, 8
    $region9: #{tpu_custom_call.1} parent=1 // pred_fallthru
      _
    // Predicated region
    $region10: #{tpu_custom_call.1} parent=1 // pred_check
      _
    $region11: #{tpu_custom_call.1} parent=1 // pred_check_branch
      %43 = sbr.rel (0) target = $region13
    $region12: #{tpu_custom_call.1} parent=1 // pred_region
      %45 = vsyncadd [#allocation6], 0
      %s47 = sshll.u32 %s2, 4
      %s48 = int_to_ptr.hbm [resolvable:$true] %s47
      %s49 = sshll.u32 [#allocation7], 4
      %s50 = int_to_ptr.vmem [resolvable:$true] %s49
      %52 = dma.hbm_to_vmem [thread:$0]  %s48, 32, %s50, [#allocation6]
    $region13: #{tpu_custom_call.1} parent=1 // pred_fallthru
      _
    // Predicated region
    $region14: #{tpu_custom_call.1} parent=1 // pred_check
      _
    $region15: #{tpu_custom_call.1} parent=1 // pred_check_branch
      %54 = sbr.rel (0) target = $region17
    $region16: #{tpu_custom_call.1} parent=1 // pred_region
      %56 = vsyncadd [#allocation9], 0
      %s57 = sshll.u32 %s3, 4
      %s58 = int_to_ptr.hbm [resolvable:$true] %s57
      %s59 = sshll.u32 [#allocation8], 4
      %s60 = int_to_ptr.vmem [resolvable:$true] %s59
      %65 = dma.hbm_to_vmem [thread:$0]  %s58, 4096, %s60, [#allocation9], 128, 128, 8
    $region17: #{tpu_custom_call.1} parent=1 // pred_fallthru
      _
    // Predicated region
    $region18: #{tpu_custom_call.1} parent=1 // pred_check
      _
    $region19: #{tpu_custom_call.1} parent=1 // pred_check_branch
      %67 = sbr.rel (0) target = $region21
    $region20: #{tpu_custom_call.1} parent=1 // pred_region
      _
    $region21: #{tpu_custom_call.1} parent=1 // pred_fallthru
      _
    // Predicated region
    $region22: #{tpu_custom_call.1} parent=1 // pred_check
      _
    $region23: #{tpu_custom_call.1} parent=1 // pred_check_branch
      %69 = sbr.rel (0) target = $region25
    $region24: #{tpu_custom_call.1} parent=1 // pred_region
      %71 = vsyncadd [#allocation9], 0
      %s72 = sshll.u32 %s5, 4
      %s73 = int_to_ptr.hbm [resolvable:$true] %s72
      %s74 = sshll.u32 [#allocation10], 4
      %s75 = int_to_ptr.vmem [resolvable:$true] %s74
      %80 = dma.hbm_to_vmem [thread:$0]  %s73, 2048, %s75, [#allocation9], 64, 64, 4
    $region25: #{tpu_custom_call.1} parent=1 // pred_fallthru
      _
    // Predicated region
    $region26: #{tpu_custom_call.1} parent=1 // pred_check
      _
    $region27: #{tpu_custom_call.1} parent=1 // pred_check_branch
      %82 = sbr.rel (0) target = $region29
    $region28: #{tpu_custom_call.1} parent=1 // pred_region
      _
    $region29: #{tpu_custom_call.1} parent=1 // pred_fallthru
      _
    // Predicated region
    $region30: #{tpu_custom_call.1} parent=1 // pred_check
      _
    $region31: #{tpu_custom_call.1} parent=1 // pred_check_branch
      %84 = sbr.rel (0) target = $region33
    $region32: #{tpu_custom_call.1} parent=1 // pred_region
      %86 = dma.done [#allocation3], 512
    $region33: #{tpu_custom_call.1} parent=1 // pred_fallthru
      _
    // Predicated region
    $region34: #{tpu_custom_call.1} parent=1 // pred_check
      _
    $region35: #{tpu_custom_call.1} parent=1 // pred_check_branch
      %88 = sbr.rel (0) target = $region37
    $region36: #{tpu_custom_call.1} parent=1 // pred_region
      %90 = dma.done [#allocation6], 4096
    $region37: #{tpu_custom_call.1} parent=1 // pred_fallthru
      _
    // Predicated region
    $region38: #{tpu_custom_call.1} parent=1 // pred_check
      _
    $region39: #{tpu_custom_call.1} parent=1 // pred_check_branch
      %92 = sbr.rel (0) target = $region41
    $region40: #{tpu_custom_call.1} parent=1 // pred_region
      %94 = dma.done [#allocation6], 32
    $region41: #{tpu_custom_call.1} parent=1 // pred_fallthru
      _
    // Predicated region
    $region42: #{tpu_custom_call.1} parent=1 // pred_check
      _
    $region43: #{tpu_custom_call.1} parent=1 // pred_check_branch
      %96 = sbr.rel (0) target = $region45
    $region44: #{tpu_custom_call.1} parent=1 // pred_region
      %98 = dma.done [#allocation9], 4096
    $region45: #{tpu_custom_call.1} parent=1 // pred_fallthru
      _
    // Predicated region
    $region46: #{tpu_custom_call.1} parent=1 // pred_check
      _
    $region47: #{tpu_custom_call.1} parent=1 // pred_check_branch
      %100 = sbr.rel (0) target = $region49
    $region48: #{tpu_custom_call.1} parent=1 // pred_region
      %102 = dma.done [#allocation9], 2048
    $region49: #{tpu_custom_call.1} parent=1 // pred_fallthru
      _
    %v103 = vld [vmem:[#allocation2] sm:$0xff]
    %v104 = vld [vmem:[#allocation2 + $0x8] sm:$0xff]
    %v105 = vld [vmem:[#allocation2 + $0x10] sm:$0xff]
    %v106 = vld [vmem:[#allocation2 + $0x18] sm:$0xff]
    %v107 = vpack.c.bf16 %v105, %v103
    %v108 = vpack.c.bf16 %v106, %v104
    %v109 = vld [vmem:[#allocation5] sm:$0xff]
    %v110 = vld [vmem:[#allocation5 + $0x8] sm:$0xff]
    %v111 = vld [vmem:[#allocation5 + $0x10] sm:$0xff]
    %v112 = vld [vmem:[#allocation5 + $0x18] sm:$0xff]
    %v113 = vld [vmem:[#allocation5 + $0x20] sm:$0xff]
    %v114 = vld [vmem:[#allocation5 + $0x28] sm:$0xff]
    %v115 = vld [vmem:[#allocation5 + $0x30] sm:$0xff]
    %v116 = vld [vmem:[#allocation5 + $0x38] sm:$0xff]
    %v117 = vld [vmem:[#allocation5 + $0x40] sm:$0xff]
    %v118 = vld [vmem:[#allocation5 + $0x48] sm:$0xff]
    %v119 = vld [vmem:[#allocation5 + $0x50] sm:$0xff]
    %v120 = vld [vmem:[#allocation5 + $0x58] sm:$0xff]
    %v121 = vld [vmem:[#allocation5 + $0x60] sm:$0xff]
    %v122 = vld [vmem:[#allocation5 + $0x68] sm:$0xff]
    %v123 = vld [vmem:[#allocation5 + $0x70] sm:$0xff]
    %v124 = vld [vmem:[#allocation5 + $0x78] sm:$0xff]
    %v125 = vld [vmem:[#allocation5 + $0x80] sm:$0xff]
    %v126 = vld [vmem:[#allocation5 + $0x88] sm:$0xff]
    %v127 = vld [vmem:[#allocation5 + $0x90] sm:$0xff]
    %v128 = vld [vmem:[#allocation5 + $0x98] sm:$0xff]
    %v129 = vld [vmem:[#allocation5 + $0xa0] sm:$0xff]
    %v130 = vld [vmem:[#allocation5 + $0xa8] sm:$0xff]
    %v131 = vld [vmem:[#allocation5 + $0xb0] sm:$0xff]
    %v132 = vld [vmem:[#allocation5 + $0xb8] sm:$0xff]
    %v133 = vld [vmem:[#allocation5 + $0xc0] sm:$0xff]
    %v134 = vld [vmem:[#allocation5 + $0xc8] sm:$0xff]
    %v135 = vld [vmem:[#allocation5 + $0xd0] sm:$0xff]
    %v136 = vld [vmem:[#allocation5 + $0xd8] sm:$0xff]
    %v137 = vld [vmem:[#allocation5 + $0xe0] sm:$0xff]
    %v138 = vld [vmem:[#allocation5 + $0xe8] sm:$0xff]
    %v139 = vld [vmem:[#allocation5 + $0xf0] sm:$0xff]
    %v140 = vld [vmem:[#allocation5 + $0xf8] sm:$0xff]
    %v141 = vld [vmem:[#allocation7] sm:$0x3]
    %v143 = vperm.slane %v141, 0
    %v144 = vperm.slane %v141, 1
    %v179 = vunpack.c.l.b16 %v109
    %v180 = vunpack.c.h.b16 %v109
    %v181 = vunpack.c.l.b16 %v110
    %v182 = vunpack.c.h.b16 %v110
    %v183 = vunpack.c.l.b16 %v111
    %v184 = vunpack.c.h.b16 %v111
    %v185 = vunpack.c.l.b16 %v112
    %v186 = vunpack.c.h.b16 %v112
    %v187 = vunpack.c.l.b16 %v113
    %v188 = vunpack.c.h.b16 %v113
    %v189 = vunpack.c.l.b16 %v114
    %v190 = vunpack.c.h.b16 %v114
    %v191 = vunpack.c.l.b16 %v115
    %v192 = vunpack.c.h.b16 %v115
    %v193 = vunpack.c.l.b16 %v116
    %v194 = vunpack.c.h.b16 %v116
    %v195 = vunpack.c.l.b16 %v117
    %v196 = vunpack.c.h.b16 %v117
    %v197 = vunpack.c.l.b16 %v118
    %v198 = vunpack.c.h.b16 %v118
    %v199 = vunpack.c.l.b16 %v119
    %v200 = vunpack.c.h.b16 %v119
    %v201 = vunpack.c.l.b16 %v120
    %v202 = vunpack.c.h.b16 %v120
    %v203 = vunpack.c.l.b16 %v121
    %v204 = vunpack.c.h.b16 %v121
    %v205 = vunpack.c.l.b16 %v122
    %v206 = vunpack.c.h.b16 %v122
    %v207 = vunpack.c.l.b16 %v123
    %v208 = vunpack.c.h.b16 %v123
    %v209 = vunpack.c.l.b16 %v124
    %v210 = vunpack.c.h.b16 %v124
    %v211 = vunpack.c.l.b16 %v125
    %v212 = vunpack.c.h.b16 %v125
    %v213 = vunpack.c.l.b16 %v126
    %v214 = vunpack.c.h.b16 %v126
    %v215 = vunpack.c.l.b16 %v127
    %v216 = vunpack.c.h.b16 %v127
    %v217 = vunpack.c.l.b16 %v128
    %v218 = vunpack.c.h.b16 %v128
    %v219 = vunpack.c.l.b16 %v129
    %v220 = vunpack.c.h.b16 %v129
    %v221 = vunpack.c.l.b16 %v130
    %v222 = vunpack.c.h.b16 %v130
    %v223 = vunpack.c.l.b16 %v131
    %v224 = vunpack.c.h.b16 %v131
    %v225 = vunpack.c.l.b16 %v132
    %v226 = vunpack.c.h.b16 %v132
    %v227 = vunpack.c.l.b16 %v133
    %v228 = vunpack.c.h.b16 %v133
    %v229 = vunpack.c.l.b16 %v134
    %v230 = vunpack.c.h.b16 %v134
    %v231 = vunpack.c.l.b16 %v135
    %v232 = vunpack.c.h.b16 %v135
    %v233 = vunpack.c.l.b16 %v136
    %v234 = vunpack.c.h.b16 %v136
    %v235 = vunpack.c.l.b16 %v137
    %v236 = vunpack.c.h.b16 %v137
    %v237 = vunpack.c.l.b16 %v138
    %v238 = vunpack.c.h.b16 %v138
    %v239 = vunpack.c.l.b16 %v139
    %v240 = vunpack.c.h.b16 %v139
    %v241 = vunpack.c.l.b16 %v140
    %v242 = vunpack.c.h.b16 %v140
    %v243 = vpack.c.b16 %v181, %v179
    %v244 = vpack.c.b16 %v182, %v180
    %v245 = vpack.c.b16 %v185, %v183
    %v246 = vpack.c.b16 %v186, %v184
    %v247 = vpack.c.b16 %v189, %v187
    %v248 = vpack.c.b16 %v190, %v188
    %v249 = vpack.c.b16 %v193, %v191
    %v250 = vpack.c.b16 %v194, %v192
    %v251 = vpack.c.b16 %v197, %v195
    %v252 = vpack.c.b16 %v198, %v196
    %v253 = vpack.c.b16 %v201, %v199
    %v254 = vpack.c.b16 %v202, %v200
    %v255 = vpack.c.b16 %v205, %v203
    %v256 = vpack.c.b16 %v206, %v204
    %v257 = vpack.c.b16 %v209, %v207
    %v258 = vpack.c.b16 %v210, %v208
    %v259 = vpack.c.b16 %v213, %v211
    %v260 = vpack.c.b16 %v214, %v212
    %v261 = vpack.c.b16 %v217, %v215
    %v262 = vpack.c.b16 %v218, %v216
    %v263 = vpack.c.b16 %v221, %v219
    %v264 = vpack.c.b16 %v222, %v220
    %v265 = vpack.c.b16 %v225, %v223
    %v266 = vpack.c.b16 %v226, %v224
    %v267 = vpack.c.b16 %v229, %v227
    %v268 = vpack.c.b16 %v230, %v228
    %v269 = vpack.c.b16 %v233, %v231
    %v270 = vpack.c.b16 %v234, %v232
    %v271 = vpack.c.b16 %v237, %v235
    %v272 = vpack.c.b16 %v238, %v236
    %v273 = vpack.c.b16 %v241, %v239
    %v274 = vpack.c.b16 %v242, %v240
    %307 = vmatpush.bf16.msra.mxu0 %v257
    %308 = vmatpush.bf16.msra.mxu0 %v255
    %309 = vmatpush.bf16.msra.mxu0 %v253
    %310 = vmatpush.bf16.msra.mxu0 %v251
    %311 = vmatpush.bf16.msra.mxu0 %v249
    %312 = vmatpush.bf16.msra.mxu0 %v247
    %313 = vmatpush.bf16.msra.mxu0 %v245
    %314 = vmatpush.bf16.msra.mxu0 %v243
    %315 = vmatmul.bf16.gmra.mxu0 %v107
    %v316 = vpop.f32.mrf.mxu0
    %v317 = vadd.f32 %v143, %v316
    %v318 = vpop.f32.mrf.mxu0
    %v319 = vadd.f32 %v143, %v318
    %320 = vdwg.mxu0
    %321 = vmatpush.bf16.msra.mxu0 %v273
    %322 = vmatpush.bf16.msra.mxu0 %v271
    %323 = vmatpush.bf16.msra.mxu0 %v269
    %324 = vmatpush.bf16.msra.mxu0 %v267
    %325 = vmatpush.bf16.msra.mxu0 %v265
    %326 = vmatpush.bf16.msra.mxu0 %v263
    %327 = vmatpush.bf16.msra.mxu0 %v261
    %328 = vmatpush.bf16.msra.mxu0 %v259
    %329 = vmatmul.bf16.gmra.mxu0 %v108
    %v330 = vpop.f32.mrf.mxu0
    %v331 = vadd.f32 %v317, %v330
    %v332 = vpop.f32.mrf.mxu0
    %v333 = vadd.f32 %v319, %v332
    %334 = vdwg.mxu0
    %335 = vmatpush.bf16.msra.mxu0 %v258
    %336 = vmatpush.bf16.msra.mxu0 %v256
    %337 = vmatpush.bf16.msra.mxu0 %v254
    %338 = vmatpush.bf16.msra.mxu0 %v252
    %339 = vmatpush.bf16.msra.mxu0 %v250
    %340 = vmatpush.bf16.msra.mxu0 %v248
    %341 = vmatpush.bf16.msra.mxu0 %v246
    %342 = vmatpush.bf16.msra.mxu0 %v244
    %343 = vmatmul.bf16.gmra.mxu0 %v107
    %v344 = vpop.f32.mrf.mxu0
    %v345 = vadd.f32 %v144, %v344
    %v346 = vpop.f32.mrf.mxu0
    %v347 = vadd.f32 %v144, %v346
    %348 = vdwg.mxu0
    %349 = vmatpush.bf16.msra.mxu0 %v274
    %350 = vmatpush.bf16.msra.mxu0 %v272
    %351 = vmatpush.bf16.msra.mxu0 %v270
    %352 = vmatpush.bf16.msra.mxu0 %v268
    %353 = vmatpush.bf16.msra.mxu0 %v266
    %354 = vmatpush.bf16.msra.mxu0 %v264
    %355 = vmatpush.bf16.msra.mxu0 %v262
    %356 = vmatpush.bf16.msra.mxu0 %v260
    %357 = vmatmul.bf16.gmra.mxu0 %v108
    %v358 = vpop.f32.mrf.mxu0
    %v359 = vadd.f32 %v345, %v358
    %v360 = vpop.f32.mrf.mxu0
    %v361 = vadd.f32 %v347, %v360
    %362 = vdwg.mxu0
    %v363 = vmax.f32 %v331, 0.0
    %v364 = vmax.f32 %v359, 0.0
    %v365 = vmax.f32 %v333, 0.0
    %v366 = vmax.f32 %v361, 0.0
    %v367 = vpack.c.bf16 %v365, %v363
    %v368 = vpack.c.bf16 %v366, %v364
    %v369 = vld [vmem:[#allocation8] sm:$0xff]
    %v370 = vld [vmem:[#allocation8 + $0x8] sm:$0xff]
    %v371 = vld [vmem:[#allocation8 + $0x10] sm:$0xff]
    %v372 = vld [vmem:[#allocation8 + $0x18] sm:$0xff]
    %v373 = vld [vmem:[#allocation8 + $0x20] sm:$0xff]
    %v374 = vld [vmem:[#allocation8 + $0x28] sm:$0xff]
    %v375 = vld [vmem:[#allocation8 + $0x30] sm:$0xff]
    %v376 = vld [vmem:[#allocation8 + $0x38] sm:$0xff]
    %v377 = vld [vmem:[#allocation8 + $0x40] sm:$0xff]
    %v378 = vld [vmem:[#allocation8 + $0x48] sm:$0xff]
    %v379 = vld [vmem:[#allocation8 + $0x50] sm:$0xff]
    %v380 = vld [vmem:[#allocation8 + $0x58] sm:$0xff]
    %v381 = vld [vmem:[#allocation8 + $0x60] sm:$0xff]
    %v382 = vld [vmem:[#allocation8 + $0x68] sm:$0xff]
    %v383 = vld [vmem:[#allocation8 + $0x70] sm:$0xff]
    %v384 = vld [vmem:[#allocation8 + $0x78] sm:$0xff]
    %v385 = vld [vmem:[#allocation8 + $0x80] sm:$0xff]
    %v386 = vld [vmem:[#allocation8 + $0x88] sm:$0xff]
    %v387 = vld [vmem:[#allocation8 + $0x90] sm:$0xff]
    %v388 = vld [vmem:[#allocation8 + $0x98] sm:$0xff]
    %v389 = vld [vmem:[#allocation8 + $0xa0] sm:$0xff]
    %v390 = vld [vmem:[#allocation8 + $0xa8] sm:$0xff]
    %v391 = vld [vmem:[#allocation8 + $0xb0] sm:$0xff]
    %v392 = vld [vmem:[#allocation8 + $0xb8] sm:$0xff]
    %v393 = vld [vmem:[#allocation8 + $0xc0] sm:$0xff]
    %v394 = vld [vmem:[#allocation8 + $0xc8] sm:$0xff]
    %v395 = vld [vmem:[#allocation8 + $0xd0] sm:$0xff]
    %v396 = vld [vmem:[#allocation8 + $0xd8] sm:$0xff]
    %v397 = vld [vmem:[#allocation8 + $0xe0] sm:$0xff]
    %v398 = vld [vmem:[#allocation8 + $0xe8] sm:$0xff]
    %v399 = vld [vmem:[#allocation8 + $0xf0] sm:$0xff]
    %v400 = vld [vmem:[#allocation8 + $0xf8] sm:$0xff]
    %v401 = vld [vmem:[%s4] sm:$0x3]
    %v403 = vperm.slane %v401, 0
    %v404 = vperm.slane %v401, 1
    %v439 = vunpack.c.l.b16 %v369
    %v440 = vunpack.c.h.b16 %v369
    %v441 = vunpack.c.l.b16 %v370
    %v442 = vunpack.c.h.b16 %v370
    %v443 = vunpack.c.l.b16 %v371
    %v444 = vunpack.c.h.b16 %v371
    %v445 = vunpack.c.l.b16 %v372
    %v446 = vunpack.c.h.b16 %v372
    %v447 = vunpack.c.l.b16 %v373
    %v448 = vunpack.c.h.b16 %v373
    %v449 = vunpack.c.l.b16 %v374
    %v450 = vunpack.c.h.b16 %v374
    %v451 = vunpack.c.l.b16 %v375
    %v452 = vunpack.c.h.b16 %v375
    %v453 = vunpack.c.l.b16 %v376
    %v454 = vunpack.c.h.b16 %v376
    %v455 = vunpack.c.l.b16 %v377
    %v456 = vunpack.c.h.b16 %v377
    %v457 = vunpack.c.l.b16 %v378
    %v458 = vunpack.c.h.b16 %v378
    %v459 = vunpack.c.l.b16 %v379
    %v460 = vunpack.c.h.b16 %v379
    %v461 = vunpack.c.l.b16 %v380
    %v462 = vunpack.c.h.b16 %v380
    %v463 = vunpack.c.l.b16 %v381
    %v464 = vunpack.c.h.b16 %v381
    %v465 = vunpack.c.l.b16 %v382
    %v466 = vunpack.c.h.b16 %v382
    %v467 = vunpack.c.l.b16 %v383
    %v468 = vunpack.c.h.b16 %v383
    %v469 = vunpack.c.l.b16 %v384
    %v470 = vunpack.c.h.b16 %v384
    %v471 = vunpack.c.l.b16 %v385
    %v472 = vunpack.c.h.b16 %v385
    %v473 = vunpack.c.l.b16 %v386
    %v474 = vunpack.c.h.b16 %v386
    %v475 = vunpack.c.l.b16 %v387
    %v476 = vunpack.c.h.b16 %v387
    %v477 = vunpack.c.l.b16 %v388
    %v478 = vunpack.c.h.b16 %v388
    %v479 = vunpack.c.l.b16 %v389
    %v480 = vunpack.c.h.b16 %v389
    %v481 = vunpack.c.l.b16 %v390
    %v482 = vunpack.c.h.b16 %v390
    %v483 = vunpack.c.l.b16 %v391
    %v484 = vunpack.c.h.b16 %v391
    %v485 = vunpack.c.l.b16 %v392
    %v486 = vunpack.c.h.b16 %v392
    %v487 = vunpack.c.l.b16 %v393
    %v488 = vunpack.c.h.b16 %v393
    %v489 = vunpack.c.l.b16 %v394
    %v490 = vunpack.c.h.b16 %v394
    %v491 = vunpack.c.l.b16 %v395
    %v492 = vunpack.c.h.b16 %v395
    %v493 = vunpack.c.l.b16 %v396
    %v494 = vunpack.c.h.b16 %v396
    %v495 = vunpack.c.l.b16 %v397
    %v496 = vunpack.c.h.b16 %v397
    %v497 = vunpack.c.l.b16 %v398
    %v498 = vunpack.c.h.b16 %v398
    %v499 = vunpack.c.l.b16 %v399
    %v500 = vunpack.c.h.b16 %v399
    %v501 = vunpack.c.l.b16 %v400
    %v502 = vunpack.c.h.b16 %v400
    %v503 = vpack.c.b16 %v441, %v439
    %v504 = vpack.c.b16 %v442, %v440
    %v505 = vpack.c.b16 %v445, %v443
    %v506 = vpack.c.b16 %v446, %v444
    %v507 = vpack.c.b16 %v449, %v447
    %v508 = vpack.c.b16 %v450, %v448
    %v509 = vpack.c.b16 %v453, %v451
    %v510 = vpack.c.b16 %v454, %v452
    %v511 = vpack.c.b16 %v457, %v455
    %v512 = vpack.c.b16 %v458, %v456
    %v513 = vpack.c.b16 %v461, %v459
    %v514 = vpack.c.b16 %v462, %v460
    %v515 = vpack.c.b16 %v465, %v463
    %v516 = vpack.c.b16 %v466, %v464
    %v517 = vpack.c.b16 %v469, %v467
    %v518 = vpack.c.b16 %v470, %v468
    %v519 = vpack.c.b16 %v473, %v471
    %v520 = vpack.c.b16 %v474, %v472
    %v521 = vpack.c.b16 %v477, %v475
    %v522 = vpack.c.b16 %v478, %v476
    %v523 = vpack.c.b16 %v481, %v479
    %v524 = vpack.c.b16 %v482, %v480
    %v525 = vpack.c.b16 %v485, %v483
    %v526 = vpack.c.b16 %v486, %v484
    %v527 = vpack.c.b16 %v489, %v487
    %v528 = vpack.c.b16 %v490, %v488
    %v529 = vpack.c.b16 %v493, %v491
    %v530 = vpack.c.b16 %v494, %v492
    %v531 = vpack.c.b16 %v497, %v495
    %v532 = vpack.c.b16 %v498, %v496
    %v533 = vpack.c.b16 %v501, %v499
    %v534 = vpack.c.b16 %v502, %v500
    %567 = vmatpush.bf16.msra.mxu0 %v517
    %568 = vmatpush.bf16.msra.mxu0 %v515
    %569 = vmatpush.bf16.msra.mxu0 %v513
    %570 = vmatpush.bf16.msra.mxu0 %v511
    %571 = vmatpush.bf16.msra.mxu0 %v509
    %572 = vmatpush.bf16.msra.mxu0 %v507
    %573 = vmatpush.bf16.msra.mxu0 %v505
    %574 = vmatpush.bf16.msra.mxu0 %v503
    %575 = vmatmul.bf16.gmra.mxu0 %v367
    %v576 = vpop.f32.mrf.mxu0
    %v577 = vadd.f32 %v403, %v576
    %v578 = vpop.f32.mrf.mxu0
    %v579 = vadd.f32 %v403, %v578
    %580 = vdwg.mxu0
    %581 = vmatpush.bf16.msra.mxu0 %v533
    %582 = vmatpush.bf16.msra.mxu0 %v531
    %583 = vmatpush.bf16.msra.mxu0 %v529
    %584 = vmatpush.bf16.msra.mxu0 %v527
    %585 = vmatpush.bf16.msra.mxu0 %v525
    %586 = vmatpush.bf16.msra.mxu0 %v523
    %587 = vmatpush.bf16.msra.mxu0 %v521
    %588 = vmatpush.bf16.msra.mxu0 %v519
    %589 = vmatmul.bf16.gmra.mxu0 %v368
    %v590 = vpop.f32.mrf.mxu0
    %v591 = vadd.f32 %v577, %v590
    %v592 = vpop.f32.mrf.mxu0
    %v593 = vadd.f32 %v579, %v592
    %594 = vdwg.mxu0
    %595 = vmatpush.bf16.msra.mxu0 %v518
    %596 = vmatpush.bf16.msra.mxu0 %v516
    %597 = vmatpush.bf16.msra.mxu0 %v514
    %598 = vmatpush.bf16.msra.mxu0 %v512
    %599 = vmatpush.bf16.msra.mxu0 %v510
    %600 = vmatpush.bf16.msra.mxu0 %v508
    %601 = vmatpush.bf16.msra.mxu0 %v506
    %602 = vmatpush.bf16.msra.mxu0 %v504
    %603 = vmatmul.bf16.gmra.mxu0 %v367
    %v604 = vpop.f32.mrf.mxu0
    %v605 = vadd.f32 %v404, %v604
    %v606 = vpop.f32.mrf.mxu0
    %v607 = vadd.f32 %v404, %v606
    %608 = vdwg.mxu0
    %609 = vmatpush.bf16.msra.mxu0 %v534
    %610 = vmatpush.bf16.msra.mxu0 %v532
    %611 = vmatpush.bf16.msra.mxu0 %v530
    %612 = vmatpush.bf16.msra.mxu0 %v528
    %613 = vmatpush.bf16.msra.mxu0 %v526
    %614 = vmatpush.bf16.msra.mxu0 %v524
    %615 = vmatpush.bf16.msra.mxu0 %v522
    %616 = vmatpush.bf16.msra.mxu0 %v520
    %617 = vmatmul.bf16.gmra.mxu0 %v368
    %v618 = vpop.f32.mrf.mxu0
    %v619 = vadd.f32 %v605, %v618
    %v620 = vpop.f32.mrf.mxu0
    %v621 = vadd.f32 %v607, %v620
    %622 = vdwg.mxu0
    %v623 = vmax.f32 %v591, 0.0
    %v624 = vmax.f32 %v619, 0.0
    %v625 = vmax.f32 %v593, 0.0
    %v626 = vmax.f32 %v621, 0.0
    %v627 = vpack.c.bf16 %v625, %v623
    %v628 = vpack.c.bf16 %v626, %v624
    %v629 = vld [vmem:[#allocation10] sm:$0xf]
    %v630 = vld [vmem:[#allocation10 + $0x4] sm:$0xf]
    %v631 = vld [vmem:[#allocation10 + $0x8] sm:$0xf]
    %v632 = vld [vmem:[#allocation10 + $0xc] sm:$0xf]
    %v633 = vld [vmem:[#allocation10 + $0x10] sm:$0xf]
    %v634 = vld [vmem:[#allocation10 + $0x14] sm:$0xf]
    %v635 = vld [vmem:[#allocation10 + $0x18] sm:$0xf]
    %v636 = vld [vmem:[#allocation10 + $0x1c] sm:$0xf]
    %v637 = vld [vmem:[#allocation10 + $0x20] sm:$0xf]
    %v638 = vld [vmem:[#allocation10 + $0x24] sm:$0xf]
    %v639 = vld [vmem:[#allocation10 + $0x28] sm:$0xf]
    %v640 = vld [vmem:[#allocation10 + $0x2c] sm:$0xf]
    %v641 = vld [vmem:[#allocation10 + $0x30] sm:$0xf]
    %v642 = vld [vmem:[#allocation10 + $0x34] sm:$0xf]
    %v643 = vld [vmem:[#allocation10 + $0x38] sm:$0xf]
    %v644 = vld [vmem:[#allocation10 + $0x3c] sm:$0xf]
    %v645 = vld [vmem:[#allocation10 + $0x40] sm:$0xf]
    %v646 = vld [vmem:[#allocation10 + $0x44] sm:$0xf]
    %v647 = vld [vmem:[#allocation10 + $0x48] sm:$0xf]
    %v648 = vld [vmem:[#allocation10 + $0x4c] sm:$0xf]
    %v649 = vld [vmem:[#allocation10 + $0x50] sm:$0xf]
    %v650 = vld [vmem:[#allocation10 + $0x54] sm:$0xf]
    %v651 = vld [vmem:[#allocation10 + $0x58] sm:$0xf]
    %v652 = vld [vmem:[#allocation10 + $0x5c] sm:$0xf]
    %v653 = vld [vmem:[#allocation10 + $0x60] sm:$0xf]
    %v654 = vld [vmem:[#allocation10 + $0x64] sm:$0xf]
    %v655 = vld [vmem:[#allocation10 + $0x68] sm:$0xf]
    %v656 = vld [vmem:[#allocation10 + $0x6c] sm:$0xf]
    %v657 = vld [vmem:[#allocation10 + $0x70] sm:$0xf]
    %v658 = vld [vmem:[#allocation10 + $0x74] sm:$0xf]
    %v659 = vld [vmem:[#allocation10 + $0x78] sm:$0xf]
    %v660 = vld [vmem:[#allocation10 + $0x7c] sm:$0xf]
    %v661 = vld [vmem:[%s6] sm:$0x1]
    %v663 = vperm.slane %v661, 0
    %v697 = vunpack.c.l.b16 %v629
    %v698 = vunpack.c.l.b16 %v630
    %v699 = vunpack.c.l.b16 %v631
    %v700 = vunpack.c.l.b16 %v632
    %v701 = vunpack.c.l.b16 %v633
    %v702 = vunpack.c.l.b16 %v634
    %v703 = vunpack.c.l.b16 %v635
    %v704 = vunpack.c.l.b16 %v636
    %v705 = vunpack.c.l.b16 %v637
    %v706 = vunpack.c.l.b16 %v638
    %v707 = vunpack.c.l.b16 %v639
    %v708 = vunpack.c.l.b16 %v640
    %v709 = vunpack.c.l.b16 %v641
    %v710 = vunpack.c.l.b16 %v642
    %v711 = vunpack.c.l.b16 %v643
    %v712 = vunpack.c.l.b16 %v644
    %v713 = vunpack.c.l.b16 %v645
    %v714 = vunpack.c.l.b16 %v646
    %v715 = vunpack.c.l.b16 %v647
    %v716 = vunpack.c.l.b16 %v648
    %v717 = vunpack.c.l.b16 %v649
    %v718 = vunpack.c.l.b16 %v650
    %v719 = vunpack.c.l.b16 %v651
    %v720 = vunpack.c.l.b16 %v652
    %v721 = vunpack.c.l.b16 %v653
    %v722 = vunpack.c.l.b16 %v654
    %v723 = vunpack.c.l.b16 %v655
    %v724 = vunpack.c.l.b16 %v656
    %v725 = vunpack.c.l.b16 %v657
    %v726 = vunpack.c.l.b16 %v658
    %v727 = vunpack.c.l.b16 %v659
    %v728 = vunpack.c.l.b16 %v660
    %v729 = vpack.c.b16 %v698, %v697
    %v730 = vpack.c.b16 %v700, %v699
    %v731 = vpack.c.b16 %v702, %v701
    %v732 = vpack.c.b16 %v704, %v703
    %v733 = vpack.c.b16 %v706, %v705
    %v734 = vpack.c.b16 %v708, %v707
    %v735 = vpack.c.b16 %v710, %v709
    %v736 = vpack.c.b16 %v712, %v711
    %v737 = vpack.c.b16 %v714, %v713
    %v738 = vpack.c.b16 %v716, %v715
    %v739 = vpack.c.b16 %v718, %v717
    %v740 = vpack.c.b16 %v720, %v719
    %v741 = vpack.c.b16 %v722, %v721
    %v742 = vpack.c.b16 %v724, %v723
    %v743 = vpack.c.b16 %v726, %v725
    %v744 = vpack.c.b16 %v728, %v727
    %761 = vmatpush.bf16.msra.mxu0 %v736
    %762 = vmatpush.bf16.msra.mxu0 %v735
    %763 = vmatpush.bf16.msra.mxu0 %v734
    %764 = vmatpush.bf16.msra.mxu0 %v733
    %765 = vmatpush.bf16.msra.mxu0 %v732
    %766 = vmatpush.bf16.msra.mxu0 %v731
    %767 = vmatpush.bf16.msra.mxu0 %v730
    %768 = vmatpush.bf16.msra.mxu0 %v729
    %769 = vmatmul.bf16.gmra.mxu0 %v627
    %v770 = vpop.f32.mrf.mxu0
    %v771 = vadd.f32 %v663, %v770
    %v772 = vpop.f32.mrf.mxu0
    %v773 = vadd.f32 %v663, %v772
    %774 = vdwg.mxu0
    %775 = vmatpush.bf16.msra.mxu0 %v744
    %776 = vmatpush.bf16.msra.mxu0 %v743
    %777 = vmatpush.bf16.msra.mxu0 %v742
    %778 = vmatpush.bf16.msra.mxu0 %v741
    %779 = vmatpush.bf16.msra.mxu0 %v740
    %780 = vmatpush.bf16.msra.mxu0 %v739
    %781 = vmatpush.bf16.msra.mxu0 %v738
    %782 = vmatpush.bf16.msra.mxu0 %v737
    %783 = vmatmul.bf16.gmra.mxu0 %v628
    %v784 = vpop.f32.mrf.mxu0
    %v785 = vadd.f32 %v771, %v784
    %v786 = vpop.f32.mrf.mxu0
    %v787 = vadd.f32 %v773, %v786
    %788 = vdwg.mxu0
    %789 = vst [vmem:[#allocation11] sm:$0xff] %v785
    %790 = vst [vmem:[#allocation11 + $0x8] sm:$0xff] %v787
    // Predicated region
    $region50: #{tpu_custom_call.1} parent=1 // pred_check
      _
    $region51: #{tpu_custom_call.1} parent=1 // pred_check_branch
      %792 = sbr.rel (0) target = $region53
    $region52: #{tpu_custom_call.1} parent=1 // pred_region
      %794 = vsyncadd [#allocation4], 0
      %s795 = sshll.u32 [#allocation11], 4
      %s796 = int_to_ptr.vmem [resolvable:$true] %s795
      %s797 = sshll.u32 %s7, 4
      %s798 = int_to_ptr.hbm [resolvable:$true] %s797
      %803 = dma.vmem_to_hbm [thread:$0]  %s796, 256, %s798, [#allocation4], 128, 128, 8
    $region53: #{tpu_custom_call.1} parent=1 // pred_fallthru
      _
    // Predicated region
    $region54: #{tpu_custom_call.1} parent=1 // pred_check
      _
    $region55: #{tpu_custom_call.1} parent=1 // pred_check_branch
      %805 = sbr.rel (0) target = $region57
    $region56: #{tpu_custom_call.1} parent=1 // pred_region
      %807 = dma.done [#allocation4], 256
    $region57: #{tpu_custom_call.1} parent=1 // pred_fallthru
      _
    %808 = vsyncpa [#allocation3], 1
    %809 = vsyncpa [#allocation6], 1
    %810 = vsyncpa [#allocation9], 1
    %811 = vsyncpa [#allocation4], 1

</llo_original>
